<compile_context>
chip_gen: v6e
topology: v6e:2x2x1
jax: 0.10.0
libtpu: 0.0.40
codegen_flags: <defaults>
</compile_context>

<pallas_src>
import functools

import jax
import jax.numpy as jnp
from jax import lax
from jax.experimental import pallas as pl
from jax.experimental.pallas import tpu as pltpu

KERNEL_SET = (2, 3, 6, 7)
MAX_K = max(KERNEL_SET)          # 7 -> receptive field = 1 + 6*dilation


def _dilated_inception_kernel(x_ref, w_ref, b_ref, o_ref, p_ref, *,
                              t_out, dil, cin, group, compute_dtype):
    """One (batch, node-tile) block.

    x_ref : (1, T, Cin, TN)        input window, nodes on the lane axis
    w_ref : (Cout, MAX_K*group)    combined tap weights (resident across grid)
    b_ref : (Cout, 1)              combined bias (f32)
    o_ref : (1, T_out, Cout, TN)   output block (f32)
    p_ref : (T_out, MAX_K*group, TN) VMEM scratch holding all dilated taps
    """
    cout = o_ref.shape[2]
    tile_n = o_ref.shape[3]

    # --- build the patch scratch with MAX_K bulk copies (no per-tau concat):
    #     p[tau, m*group + ci, n] = x[tau + m*dil, ci, n]
    if group != cin:
        # zero the channel-pad rows once per block (combined weight is zero
        # there, but uninitialized VMEM could be NaN and poison 0*x).
        pad = jnp.zeros((t_out, group - cin, tile_n), dtype=compute_dtype)
        for m in range(MAX_K):
            p_ref[:, m * group + cin:(m + 1) * group, :] = pad
    for m in range(MAX_K):
        p_ref[:, m * group:m * group + cin, :] = (
            x_ref[0, pl.ds(m * dil, t_out)].astype(compute_dtype))

    w = w_ref[...]
    # Hoisted: JAX does not CSE broadcast_in_dim, so do it once per block.
    bias = jnp.broadcast_to(b_ref[...], (cout, tile_n))

    def step(tau):
        # (Cout, MAX_K*group) @ (MAX_K*group, TN) -> (Cout, TN) on the MXU.
        y = jnp.dot(w, p_ref[tau], preferred_element_type=jnp.float32)
        o_ref[0, tau] = (y + bias).astype(o_ref.dtype)

    if t_out <= 16:
        # Small receptive-field regime: fully static unroll (LLO-schedulable).
        for tau in range(t_out):
            step(tau)
    else:
        # Long-sequence guard: bound live ranges / code size.
        def body(tau, carry):
            step(tau)
            return carry
        lax.fori_loop(0, t_out, body, 0, unroll=8)


def dilated_inception_lanes(x, weights, biases, dilation_factor=2, *,
                            tile_n=None, compute_dtype=jnp.bfloat16):
    """Layout-native entry point (use this inside a model: no HBM transposes).

    x        : (B, T, Cin, N)  any float dtype (bf16 input halves HBM traffic)
    weights  : list of 4 arrays, weights[i] of shape (cout/4, Cin, 1, k_i)
    biases   : list of 4 arrays of shape (cout/4,)
    returns  : (B, T_out, Cout, N) float32, T_out = T - dilation_factor*(MAX_K-1)
    """
    B, T, Cin, N = x.shape
    d = int(dilation_factor)
    cb = weights[0].shape[0]
    Cout = cb * len(KERNEL_SET)
    T_out = T - d * (MAX_K - 1)
    assert T_out >= 1, "sequence too short for the k=7 dilated kernel"

    # Channel-group stride of the combined contraction axis: keep each tap's
    # slab sublane-aligned (multiple of 8) unless Cin already is.
    G = Cin if Cin % 8 == 0 else ((Cin + 7) // 8) * 8
    K = MAX_K * G

    # ---- combined weight / bias (tiny, built once) --------------------------
    # Wc[i*cb + co, m, ci] = w_i[co, ci, 0, m - (MAX_K - k_i)]  for m >= MAX_K - k_i
    Wc = jnp.zeros((Cout, MAX_K, G), dtype=jnp.float32)
    bc = jnp.zeros((Cout,), dtype=jnp.float32)
    for i, k in enumerate(KERNEL_SET):
        w = jnp.asarray(weights[i], jnp.float32)[:, :, 0, :]     # (cb, Cin, k)
        w = jnp.transpose(w, (0, 2, 1))                          # (cb, k, Cin)
        Wc = Wc.at[i * cb:(i + 1) * cb, MAX_K - k:, :Cin].set(w)
        bc = bc.at[i * cb:(i + 1) * cb].set(jnp.asarray(biases[i], jnp.float32))
    Wc = Wc.reshape(Cout, K).astype(compute_dtype)
    bc = bc.reshape(Cout, 1)

    # ---- tiling: nodes on lanes, budget for 2x(in+out) blocks + scratch -----
    x_bytes = jnp.dtype(x.dtype).itemsize
    c_bytes = jnp.dtype(compute_dtype).itemsize
    per_node = (2 * T * Cin * x_bytes            # double-buffered input block
                + 2 * T_out * Cout * 4           # double-buffered output block
                + T_out * K * c_bytes)           # tap scratch
    if tile_n is None:
        budget = 12 << 20                        # fits v5e/v6e/v7x scoped VMEM
        cap = max(256, budget // max(per_node, 1))
        if N <= cap:
            tile_n = N
        else:
            # multiples of 256 fill the 256-lane MXU on v6e/v7x
            tile_n = max(256, (cap // 256) * 256)
        if B == 1 and tile_n == N and N >= 256:
            # keep >=2 independent grid tiles so both v7x TensorCores get work
            tile_n = max(128, (-(-N // 2) // 128) * 128)
    n_tiles = pl.cdiv(N, tile_n)
    # NOTE: if N % tile_n != 0 the last block reads padded/undefined lanes of
    # x; this is benign (lanes are independent, OOB lanes are dropped on write).

    vmem_need = per_node * tile_n + Cout * (K * c_bytes + 4)
    vmem_limit = int(min(max(2 * vmem_need, 32 << 20), 48 << 20))

    kernel = functools.partial(_dilated_inception_kernel, t_out=T_out, dil=d,
                               cin=Cin, group=G, compute_dtype=compute_dtype)

    return pl.pallas_call(
        kernel,
        out_shape=jax.ShapeDtypeStruct((B, T_out, Cout, N), jnp.float32),
        grid=(B, n_tiles),
        in_specs=[
            pl.BlockSpec((1, T, Cin, tile_n), lambda b, j: (b, 0, 0, j)),
            pl.BlockSpec((Cout, K), lambda b, j: (0, 0)),
            pl.BlockSpec((Cout, 1), lambda b, j: (0, 0)),
        ],
        out_specs=pl.BlockSpec((1, T_out, Cout, tile_n),
                               lambda b, j: (b, 0, 0, j)),
        scratch_shapes=[pltpu.VMEM((T_out, K, tile_n), compute_dtype)],
        compiler_params=pltpu.CompilerParams(
            dimension_semantics=("parallel", "parallel"),
            vmem_limit_bytes=vmem_limit),
    )(x, Wc, bc)


def dilated_inception_forward(x, weights, biases, dilation_factor=2, **kwargs):
    """PyTorch-layout shim: x (B, Cin, N, T) -> (B, Cout, N, T_out).

    The two transposes below exist only to match the nn.Module interface for
    standalone testing; inside a model, produce/consume the lane-dense
    (B, T, C, N) layout and call `dilated_inception_lanes` directly so no HBM
    layout pass is needed.  Transpose + bf16 cast fuse into a single pass.
    """
    cdt = kwargs.get("compute_dtype", jnp.bfloat16)
    x2 = jnp.transpose(jnp.asarray(x), (0, 3, 1, 2)).astype(cdt)  # (B,T,Cin,N)
    out2 = dilated_inception_lanes(x2, weights, biases, dilation_factor, **kwargs)
    return jnp.transpose(out2, (0, 2, 3, 1))                      # (B,Cout,N,T_out)


def _reference(x, weights, biases, d):
    """Pure-JAX reference: the literal PyTorch forward."""
    branches = []
    for i, k in enumerate(KERNEL_SET):
        y = lax.conv_general_dilated(
            x, weights[i], window_strides=(1, 1), padding="VALID",
            rhs_dilation=(1, d), dimension_numbers=("NCHW", "OIHW", "NCHW"))
        branches.append(y + biases[i][None, :, None, None])
    t_out = branches[-1].shape[-1]
    return jnp.concatenate([r[..., -t_out:] for r in branches], axis=1)


def _make_case(key, B, Cin, Cout, N, T):
    # Small-integer data keeps the check exact for bf16 operands / f32 accum.
    cb = Cout // len(KERNEL_SET)
    keys = jax.random.split(key, 1 + 2 * len(KERNEL_SET))
    x = jax.random.randint(keys[0], (B, Cin, N, T), -2, 3).astype(jnp.float32)
    ws, bs = [], []
    for i, k in enumerate(KERNEL_SET):
        ws.append(jax.random.randint(keys[1 + 2 * i], (cb, Cin, 1, k), -2, 3)
                  .astype(jnp.float32))
        bs.append(jax.random.randint(keys[2 + 2 * i], (cb,), -2, 3)
                  .astype(jnp.float32))
    return x, ws, bs


if __name__ == "__main__":
    d = 2

    # --- test 1: module-shaped smoke test (PyTorch layout), B=2, Cin=4,
    #     Cout=8, N=16, T=20  ->  T_out = 20 - 2*6 = 8.
    x, ws, bs = _make_case(jax.random.PRNGKey(0), B=2, Cin=4, Cout=8, N=16, T=20)
    out = jax.block_until_ready(dilated_inception_forward(x, ws, bs, dilation_factor=d))
    ref = _reference(x, ws, bs, d)
    assert out.shape == ref.shape == (2, 8, 16, 8), (out.shape, ref.shape)
    assert out.dtype == jnp.float32
    assert bool(jnp.allclose(out, ref, atol=1e-4, rtol=1e-4)), (
        "max abs diff = %f" % float(jnp.max(jnp.abs(out - ref))))

    # --- test 2: ragged node tiling (N=144 with tile_n=128 -> 2 tiles, second
    #     tile partially out of range) and Cin already a sublane multiple.
    x2, ws2, bs2 = _make_case(jax.random.PRNGKey(1), B=1, Cin=8, Cout=16, N=144, T=16)
    out2 = jax.block_until_ready(
        dilated_inception_forward(x2, ws2, bs2, dilation_factor=d, tile_n=128))
    ref2 = _reference(x2, ws2, bs2, d)
    assert out2.shape == ref2.shape == (1, 16, 144, 4), (out2.shape, ref2.shape)
    assert bool(jnp.allclose(out2, ref2, atol=1e-4, rtol=1e-4)), (
        "max abs diff = %f" % float(jnp.max(jnp.abs(out2 - ref2))))

    print("KERNEL_OK")
</pallas_src>

<mosaic_0001>
module attributes {stable_mosaic.version = 11 : i64} {
  func.func @_dilated_inception_kernel(%arg0: i32, %arg1: i32, %arg2: memref<1x20x4x16xbf16, #tpu.memory_space<vmem>>, %arg3: memref<8x56xbf16, #tpu.memory_space<vmem>>, %arg4: memref<8x1xf32, #tpu.memory_space<vmem>>, %arg5: memref<1x8x8x16xf32, #tpu.memory_space<vmem>>, %arg6: memref<8x56x16xbf16, #tpu.memory_space<vmem>>) attributes {dimension_semantics = [#tpu.dimension_semantics<parallel>, #tpu.dimension_semantics<parallel>], iteration_bounds = array<i64: 2, 1>, scalar_prefetch = 0 : i64, scratch_operands = 1 : i64, tpu.core_type = #tpu.core_type<tc>, window_params = [{transform_indices = @transform_0, window_bounds = array<i64: 1, 20, 4, 16>}, {pipeline_mode = #tpu.pipeline_mode<synchronous>, transform_indices = @transform_1, window_bounds = array<i64: 8, 56>}, {pipeline_mode = #tpu.pipeline_mode<synchronous>, transform_indices = @transform_2, window_bounds = array<i64: 8, 1>}, {transform_indices = @transform_3, window_bounds = array<i64: 1, 8, 8, 16>}]} {
    %cst = arith.constant 0.000000e+00 : bf16
    %0 = vector.broadcast %cst : bf16 to vector<8x4x16xbf16>
    %c0 = arith.constant 0 : index
    %c4 = arith.constant 4 : index
    %c0_0 = arith.constant 0 : index
    %1 = vector.load %arg6[%c0, %c4, %c0_0] : memref<8x56x16xbf16, #tpu.memory_space<vmem>>, vector<8x4x16xbf16>
    tpu.vector_store %arg6[%c0, %c4, %c0_0], %0 {strides = array<i32>} : memref<8x56x16xbf16, #tpu.memory_space<vmem>>, vector<8x4x16xbf16>,
    %c0_1 = arith.constant 0 : index
    %c12 = arith.constant 12 : index
    %c0_2 = arith.constant 0 : index
    %2 = vector.load %arg6[%c0_1, %c12, %c0_2] : memref<8x56x16xbf16, #tpu.memory_space<vmem>>, vector<8x4x16xbf16>
    tpu.vector_store %arg6[%c0_1, %c12, %c0_2], %0 {strides = array<i32>} : memref<8x56x16xbf16, #tpu.memory_space<vmem>>, vector<8x4x16xbf16>,
    %c0_3 = arith.constant 0 : index
    %c20 = arith.constant 20 : index
    %c0_4 = arith.constant 0 : index
    %3 = vector.load %arg6[%c0_3, %c20, %c0_4] : memref<8x56x16xbf16, #tpu.memory_space<vmem>>, vector<8x4x16xbf16>
    tpu.vector_store %arg6[%c0_3, %c20, %c0_4], %0 {strides = array<i32>} : memref<8x56x16xbf16, #tpu.memory_space<vmem>>, vector<8x4x16xbf16>,
    %c0_5 = arith.constant 0 : index
    %c28 = arith.constant 28 : index
    %c0_6 = arith.constant 0 : index
    %4 = vector.load %arg6[%c0_5, %c28, %c0_6] : memref<8x56x16xbf16, #tpu.memory_space<vmem>>, vector<8x4x16xbf16>
    tpu.vector_store %arg6[%c0_5, %c28, %c0_6], %0 {strides = array<i32>} : memref<8x56x16xbf16, #tpu.memory_space<vmem>>, vector<8x4x16xbf16>,
    %c0_7 = arith.constant 0 : index
    %c36 = arith.constant 36 : index
    %c0_8 = arith.constant 0 : index
    %5 = vector.load %arg6[%c0_7, %c36, %c0_8] : memref<8x56x16xbf16, #tpu.memory_space<vmem>>, vector<8x4x16xbf16>
    tpu.vector_store %arg6[%c0_7, %c36, %c0_8], %0 {strides = array<i32>} : memref<8x56x16xbf16, #tpu.memory_space<vmem>>, vector<8x4x16xbf16>,
    %c0_9 = arith.constant 0 : index
    %c44 = arith.constant 44 : index
    %c0_10 = arith.constant 0 : index
    %6 = vector.load %arg6[%c0_9, %c44, %c0_10] : memref<8x56x16xbf16, #tpu.memory_space<vmem>>, vector<8x4x16xbf16>
    tpu.vector_store %arg6[%c0_9, %c44, %c0_10], %0 {strides = array<i32>} : memref<8x56x16xbf16, #tpu.memory_space<vmem>>, vector<8x4x16xbf16>,
    %c0_11 = arith.constant 0 : index
    %c52 = arith.constant 52 : index
    %c0_12 = arith.constant 0 : index
    %7 = vector.load %arg6[%c0_11, %c52, %c0_12] : memref<8x56x16xbf16, #tpu.memory_space<vmem>>, vector<8x4x16xbf16>
    tpu.vector_store %arg6[%c0_11, %c52, %c0_12], %0 {strides = array<i32>} : memref<8x56x16xbf16, #tpu.memory_space<vmem>>, vector<8x4x16xbf16>,
    %c0_13 = arith.constant 0 : index
    %c0_14 = arith.constant 0 : index
    %c0_15 = arith.constant 0 : index
    %c0_16 = arith.constant 0 : index
    %8 = vector.load %arg2[%c0_13, %c0_14, %c0_15, %c0_16] : memref<1x20x4x16xbf16, #tpu.memory_space<vmem>>, vector<1x8x4x16xbf16>
    %9 = vector.shape_cast %8 : vector<1x8x4x16xbf16> to vector<8x4x16xbf16>
    %c0_17 = arith.constant 0 : index
    %c0_18 = arith.constant 0 : index
    %c0_19 = arith.constant 0 : index
    %10 = vector.load %arg6[%c0_17, %c0_18, %c0_19] : memref<8x56x16xbf16, #tpu.memory_space<vmem>>, vector<8x4x16xbf16>
    tpu.vector_store %arg6[%c0_17, %c0_18, %c0_19], %9 {strides = array<i32>} : memref<8x56x16xbf16, #tpu.memory_space<vmem>>, vector<8x4x16xbf16>,
    %c0_20 = arith.constant 0 : index
    %c2 = arith.constant 2 : index
    %c0_21 = arith.constant 0 : index
    %c0_22 = arith.constant 0 : index
    %11 = vector.load %arg2[%c0_20, %c2, %c0_21, %c0_22] : memref<1x20x4x16xbf16, #tpu.memory_space<vmem>>, vector<1x8x4x16xbf16>
    %12 = vector.shape_cast %11 : vector<1x8x4x16xbf16> to vector<8x4x16xbf16>
    %c0_23 = arith.constant 0 : index
    %c8 = arith.constant 8 : index
    %c0_24 = arith.constant 0 : index
    %13 = vector.load %arg6[%c0_23, %c8, %c0_24] : memref<8x56x16xbf16, #tpu.memory_space<vmem>>, vector<8x4x16xbf16>
    tpu.vector_store %arg6[%c0_23, %c8, %c0_24], %12 {strides = array<i32>} : memref<8x56x16xbf16, #tpu.memory_space<vmem>>, vector<8x4x16xbf16>,
    %c0_25 = arith.constant 0 : index
    %c4_26 = arith.constant 4 : index
    %c0_27 = arith.constant 0 : index
    %c0_28 = arith.constant 0 : index
    %14 = vector.load %arg2[%c0_25, %c4_26, %c0_27, %c0_28] : memref<1x20x4x16xbf16, #tpu.memory_space<vmem>>, vector<1x8x4x16xbf16>
    %15 = vector.shape_cast %14 : vector<1x8x4x16xbf16> to vector<8x4x16xbf16>
    %c0_29 = arith.constant 0 : index
    %c16 = arith.constant 16 : index
    %c0_30 = arith.constant 0 : index
    %16 = vector.load %arg6[%c0_29, %c16, %c0_30] : memref<8x56x16xbf16, #tpu.memory_space<vmem>>, vector<8x4x16xbf16>
    tpu.vector_store %arg6[%c0_29, %c16, %c0_30], %15 {strides = array<i32>} : memref<8x56x16xbf16, #tpu.memory_space<vmem>>, vector<8x4x16xbf16>,
    %c0_31 = arith.constant 0 : index
    %c6 = arith.constant 6 : index
    %c0_32 = arith.constant 0 : index
    %c0_33 = arith.constant 0 : index
    %17 = vector.load %arg2[%c0_31, %c6, %c0_32, %c0_33] : memref<1x20x4x16xbf16, #tpu.memory_space<vmem>>, vector<1x8x4x16xbf16>
    %18 = vector.shape_cast %17 : vector<1x8x4x16xbf16> to vector<8x4x16xbf16>
    %c0_34 = arith.constant 0 : index
    %c24 = arith.constant 24 : index
    %c0_35 = arith.constant 0 : index
    %19 = vector.load %arg6[%c0_34, %c24, %c0_35] : memref<8x56x16xbf16, #tpu.memory_space<vmem>>, vector<8x4x16xbf16>
    tpu.vector_store %arg6[%c0_34, %c24, %c0_35], %18 {strides = array<i32>} : memref<8x56x16xbf16, #tpu.memory_space<vmem>>, vector<8x4x16xbf16>,
    %c0_36 = arith.constant 0 : index
    %c8_37 = arith.constant 8 : index
    %c0_38 = arith.constant 0 : index
    %c0_39 = arith.constant 0 : index
    %20 = vector.load %arg2[%c0_36, %c8_37, %c0_38, %c0_39] : memref<1x20x4x16xbf16, #tpu.memory_space<vmem>>, vector<1x8x4x16xbf16>
    %21 = vector.shape_cast %20 : vector<1x8x4x16xbf16> to vector<8x4x16xbf16>
    %c0_40 = arith.constant 0 : index
    %c32 = arith.constant 32 : index
    %c0_41 = arith.constant 0 : index
    %22 = vector.load %arg6[%c0_40, %c32, %c0_41] : memref<8x56x16xbf16, #tpu.memory_space<vmem>>, vector<8x4x16xbf16>
    tpu.vector_store %arg6[%c0_40, %c32, %c0_41], %21 {strides = array<i32>} : memref<8x56x16xbf16, #tpu.memory_space<vmem>>, vector<8x4x16xbf16>,
    %c0_42 = arith.constant 0 : index
    %c10 = arith.constant 10 : index
    %c0_43 = arith.constant 0 : index
    %c0_44 = arith.constant 0 : index
    %23 = vector.load %arg2[%c0_42, %c10, %c0_43, %c0_44] : memref<1x20x4x16xbf16, #tpu.memory_space<vmem>>, vector<1x8x4x16xbf16>
    %24 = vector.shape_cast %23 : vector<1x8x4x16xbf16> to vector<8x4x16xbf16>
    %c0_45 = arith.constant 0 : index
    %c40 = arith.constant 40 : index
    %c0_46 = arith.constant 0 : index
    %25 = vector.load %arg6[%c0_45, %c40, %c0_46] : memref<8x56x16xbf16, #tpu.memory_space<vmem>>, vector<8x4x16xbf16>
    tpu.vector_store %arg6[%c0_45, %c40, %c0_46], %24 {strides = array<i32>} : memref<8x56x16xbf16, #tpu.memory_space<vmem>>, vector<8x4x16xbf16>,
    %c0_47 = arith.constant 0 : index
    %c12_48 = arith.constant 12 : index
    %c0_49 = arith.constant 0 : index
    %c0_50 = arith.constant 0 : index
    %26 = vector.load %arg2[%c0_47, %c12_48, %c0_49, %c0_50] : memref<1x20x4x16xbf16, #tpu.memory_space<vmem>>, vector<1x8x4x16xbf16>
    %27 = vector.shape_cast %26 : vector<1x8x4x16xbf16> to vector<8x4x16xbf16>
    %c0_51 = arith.constant 0 : index
    %c48 = arith.constant 48 : index
    %c0_52 = arith.constant 0 : index
    %28 = vector.load %arg6[%c0_51, %c48, %c0_52] : memref<8x56x16xbf16, #tpu.memory_space<vmem>>, vector<8x4x16xbf16>
    tpu.vector_store %arg6[%c0_51, %c48, %c0_52], %27 {strides = array<i32>} : memref<8x56x16xbf16, #tpu.memory_space<vmem>>, vector<8x4x16xbf16>,
    %c0_53 = arith.constant 0 : index
    %c0_54 = arith.constant 0 : index
    %29 = vector.load %arg3[%c0_53, %c0_54] : memref<8x56xbf16, #tpu.memory_space<vmem>>, vector<8x56xbf16>
    %c0_55 = arith.constant 0 : index
    %c0_56 = arith.constant 0 : index
    %30 = vector.load %arg4[%c0_55, %c0_56] : memref<8x1xf32, #tpu.memory_space<vmem>>, vector<8x1xf32>
    %31 = vector.shape_cast %30 : vector<8x1xf32> to vector<8x1xf32>
    %32 = vector.broadcast %31 : vector<8x1xf32> to vector<8x16xf32>
    %c0_57 = arith.constant 0 : index
    %c0_58 = arith.constant 0 : index
    %c0_59 = arith.constant 0 : index
    %33 = vector.load %arg6[%c0_57, %c0_58, %c0_59] : memref<8x56x16xbf16, #tpu.memory_space<vmem>>, vector<1x56x16xbf16>
    %34 = vector.shape_cast %33 : vector<1x56x16xbf16> to vector<56x16xbf16>
    %cst_60 = arith.constant dense<0.000000e+00> : vector<8x16xf32>
    %35 = tpu.matmul %29, %34, %cst_60 {dimension_numbers = #tpu.dot_dimension_numbers<[1], [0], [0], [1], [0, 0, 1, 1], [], []>} : vector<8x56xbf16>, vector<56x16xbf16>, vector<8x16xf32> -> vector<8x16xf32>
    %36 = arith.addf %35, %32 : vector<8x16xf32>
    %c0_61 = arith.constant 0 : index
    %c0_62 = arith.constant 0 : index
    %c0_63 = arith.constant 0 : index
    %c0_64 = arith.constant 0 : index
    %37 = vector.load %arg5[%c0_61, %c0_62, %c0_63, %c0_64] : memref<1x8x8x16xf32, #tpu.memory_space<vmem>>, vector<1x1x8x16xf32>
    %38 = vector.shape_cast %37 : vector<1x1x8x16xf32> to vector<8x16xf32>
    %39 = vector.shape_cast %36 : vector<8x16xf32> to vector<1x1x8x16xf32>
    tpu.vector_store %arg5[%c0_61, %c0_62, %c0_63, %c0_64], %39 {strides = array<i32>} : memref<1x8x8x16xf32, #tpu.memory_space<vmem>>, vector<1x1x8x16xf32>,
    %c1 = arith.constant 1 : index
    %c0_65 = arith.constant 0 : index
    %c0_66 = arith.constant 0 : index
    %40 = vector.load %arg6[%c1, %c0_65, %c0_66] : memref<8x56x16xbf16, #tpu.memory_space<vmem>>, vector<1x56x16xbf16>
    %41 = vector.shape_cast %40 : vector<1x56x16xbf16> to vector<56x16xbf16>
    %cst_67 = arith.constant dense<0.000000e+00> : vector<8x16xf32>
    %42 = tpu.matmul %29, %41, %cst_67 {dimension_numbers = #tpu.dot_dimension_numbers<[1], [0], [0], [1], [0, 0, 1, 1], [], []>} : vector<8x56xbf16>, vector<56x16xbf16>, vector<8x16xf32> -> vector<8x16xf32>
    %43 = arith.addf %42, %32 : vector<8x16xf32>
    %c0_68 = arith.constant 0 : index
    %c1_69 = arith.constant 1 : index
    %c0_70 = arith.constant 0 : index
    %c0_71 = arith.constant 0 : index
    %44 = vector.load %arg5[%c0_68, %c1_69, %c0_70, %c0_71] : memref<1x8x8x16xf32, #tpu.memory_space<vmem>>, vector<1x1x8x16xf32>
    %45 = vector.shape_cast %44 : vector<1x1x8x16xf32> to vector<8x16xf32>
    %46 = vector.shape_cast %43 : vector<8x16xf32> to vector<1x1x8x16xf32>
    tpu.vector_store %arg5[%c0_68, %c1_69, %c0_70, %c0_71], %46 {strides = array<i32>} : memref<1x8x8x16xf32, #tpu.memory_space<vmem>>, vector<1x1x8x16xf32>,
    %c2_72 = arith.constant 2 : index
    %c0_73 = arith.constant 0 : index
    %c0_74 = arith.constant 0 : index
    %47 = vector.load %arg6[%c2_72, %c0_73, %c0_74] : memref<8x56x16xbf16, #tpu.memory_space<vmem>>, vector<1x56x16xbf16>
    %48 = vector.shape_cast %47 : vector<1x56x16xbf16> to vector<56x16xbf16>
    %cst_75 = arith.constant dense<0.000000e+00> : vector<8x16xf32>
    %49 = tpu.matmul %29, %48, %cst_75 {dimension_numbers = #tpu.dot_dimension_numbers<[1], [0], [0], [1], [0, 0, 1, 1], [], []>} : vector<8x56xbf16>, vector<56x16xbf16>, vector<8x16xf32> -> vector<8x16xf32>
    %50 = arith.addf %49, %32 : vector<8x16xf32>
    %c0_76 = arith.constant 0 : index
    %c2_77 = arith.constant 2 : index
    %c0_78 = arith.constant 0 : index
    %c0_79 = arith.constant 0 : index
    %51 = vector.load %arg5[%c0_76, %c2_77, %c0_78, %c0_79] : memref<1x8x8x16xf32, #tpu.memory_space<vmem>>, vector<1x1x8x16xf32>
    %52 = vector.shape_cast %51 : vector<1x1x8x16xf32> to vector<8x16xf32>
    %53 = vector.shape_cast %50 : vector<8x16xf32> to vector<1x1x8x16xf32>
    tpu.vector_store %arg5[%c0_76, %c2_77, %c0_78, %c0_79], %53 {strides = array<i32>} : memref<1x8x8x16xf32, #tpu.memory_space<vmem>>, vector<1x1x8x16xf32>,
    %c3 = arith.constant 3 : index
    %c0_80 = arith.constant 0 : index
    %c0_81 = arith.constant 0 : index
    %54 = vector.load %arg6[%c3, %c0_80, %c0_81] : memref<8x56x16xbf16, #tpu.memory_space<vmem>>, vector<1x56x16xbf16>
    %55 = vector.shape_cast %54 : vector<1x56x16xbf16> to vector<56x16xbf16>
    %cst_82 = arith.constant dense<0.000000e+00> : vector<8x16xf32>
    %56 = tpu.matmul %29, %55, %cst_82 {dimension_numbers = #tpu.dot_dimension_numbers<[1], [0], [0], [1], [0, 0, 1, 1], [], []>} : vector<8x56xbf16>, vector<56x16xbf16>, vector<8x16xf32> -> vector<8x16xf32>
    %57 = arith.addf %56, %32 : vector<8x16xf32>
    %c0_83 = arith.constant 0 : index
    %c3_84 = arith.constant 3 : index
    %c0_85 = arith.constant 0 : index
    %c0_86 = arith.constant 0 : index
    %58 = vector.load %arg5[%c0_83, %c3_84, %c0_85, %c0_86] : memref<1x8x8x16xf32, #tpu.memory_space<vmem>>, vector<1x1x8x16xf32>
    %59 = vector.shape_cast %58 : vector<1x1x8x16xf32> to vector<8x16xf32>
    %60 = vector.shape_cast %57 : vector<8x16xf32> to vector<1x1x8x16xf32>
    tpu.vector_store %arg5[%c0_83, %c3_84, %c0_85, %c0_86], %60 {strides = array<i32>} : memref<1x8x8x16xf32, #tpu.memory_space<vmem>>, vector<1x1x8x16xf32>,
    %c4_87 = arith.constant 4 : index
    %c0_88 = arith.constant 0 : index
    %c0_89 = arith.constant 0 : index
    %61 = vector.load %arg6[%c4_87, %c0_88, %c0_89] : memref<8x56x16xbf16, #tpu.memory_space<vmem>>, vector<1x56x16xbf16>
    %62 = vector.shape_cast %61 : vector<1x56x16xbf16> to vector<56x16xbf16>
    %cst_90 = arith.constant dense<0.000000e+00> : vector<8x16xf32>
    %63 = tpu.matmul %29, %62, %cst_90 {dimension_numbers = #tpu.dot_dimension_numbers<[1], [0], [0], [1], [0, 0, 1, 1], [], []>} : vector<8x56xbf16>, vector<56x16xbf16>, vector<8x16xf32> -> vector<8x16xf32>
    %64 = arith.addf %63, %32 : vector<8x16xf32>
    %c0_91 = arith.constant 0 : index
    %c4_92 = arith.constant 4 : index
    %c0_93 = arith.constant 0 : index
    %c0_94 = arith.constant 0 : index
    %65 = vector.load %arg5[%c0_91, %c4_92, %c0_93, %c0_94] : memref<1x8x8x16xf32, #tpu.memory_space<vmem>>, vector<1x1x8x16xf32>
    %66 = vector.shape_cast %65 : vector<1x1x8x16xf32> to vector<8x16xf32>
    %67 = vector.shape_cast %64 : vector<8x16xf32> to vector<1x1x8x16xf32>
    tpu.vector_store %arg5[%c0_91, %c4_92, %c0_93, %c0_94], %67 {strides = array<i32>} : memref<1x8x8x16xf32, #tpu.memory_space<vmem>>, vector<1x1x8x16xf32>,
    %c5 = arith.constant 5 : index
    %c0_95 = arith.constant 0 : index
    %c0_96 = arith.constant 0 : index
    %68 = vector.load %arg6[%c5, %c0_95, %c0_96] : memref<8x56x16xbf16, #tpu.memory_space<vmem>>, vector<1x56x16xbf16>
    %69 = vector.shape_cast %68 : vector<1x56x16xbf16> to vector<56x16xbf16>
    %cst_97 = arith.constant dense<0.000000e+00> : vector<8x16xf32>
    %70 = tpu.matmul %29, %69, %cst_97 {dimension_numbers = #tpu.dot_dimension_numbers<[1], [0], [0], [1], [0, 0, 1, 1], [], []>} : vector<8x56xbf16>, vector<56x16xbf16>, vector<8x16xf32> -> vector<8x16xf32>
    %71 = arith.addf %70, %32 : vector<8x16xf32>
    %c0_98 = arith.constant 0 : index
    %c5_99 = arith.constant 5 : index
    %c0_100 = arith.constant 0 : index
    %c0_101 = arith.constant 0 : index
    %72 = vector.load %arg5[%c0_98, %c5_99, %c0_100, %c0_101] : memref<1x8x8x16xf32, #tpu.memory_space<vmem>>, vector<1x1x8x16xf32>
    %73 = vector.shape_cast %72 : vector<1x1x8x16xf32> to vector<8x16xf32>
    %74 = vector.shape_cast %71 : vector<8x16xf32> to vector<1x1x8x16xf32>
    tpu.vector_store %arg5[%c0_98, %c5_99, %c0_100, %c0_101], %74 {strides = array<i32>} : memref<1x8x8x16xf32, #tpu.memory_space<vmem>>, vector<1x1x8x16xf32>,
    %c6_102 = arith.constant 6 : index
    %c0_103 = arith.constant 0 : index
    %c0_104 = arith.constant 0 : index
    %75 = vector.load %arg6[%c6_102, %c0_103, %c0_104] : memref<8x56x16xbf16, #tpu.memory_space<vmem>>, vector<1x56x16xbf16>
    %76 = vector.shape_cast %75 : vector<1x56x16xbf16> to vector<56x16xbf16>
    %cst_105 = arith.constant dense<0.000000e+00> : vector<8x16xf32>
    %77 = tpu.matmul %29, %76, %cst_105 {dimension_numbers = #tpu.dot_dimension_numbers<[1], [0], [0], [1], [0, 0, 1, 1], [], []>} : vector<8x56xbf16>, vector<56x16xbf16>, vector<8x16xf32> -> vector<8x16xf32>
    %78 = arith.addf %77, %32 : vector<8x16xf32>
    %c0_106 = arith.constant 0 : index
    %c6_107 = arith.constant 6 : index
    %c0_108 = arith.constant 0 : index
    %c0_109 = arith.constant 0 : index
    %79 = vector.load %arg5[%c0_106, %c6_107, %c0_108, %c0_109] : memref<1x8x8x16xf32, #tpu.memory_space<vmem>>, vector<1x1x8x16xf32>
    %80 = vector.shape_cast %79 : vector<1x1x8x16xf32> to vector<8x16xf32>
    %81 = vector.shape_cast %78 : vector<8x16xf32> to vector<1x1x8x16xf32>
    tpu.vector_store %arg5[%c0_106, %c6_107, %c0_108, %c0_109], %81 {strides = array<i32>} : memref<1x8x8x16xf32, #tpu.memory_space<vmem>>, vector<1x1x8x16xf32>,
    %c7 = arith.constant 7 : index
    %c0_110 = arith.constant 0 : index
    %c0_111 = arith.constant 0 : index
    %82 = vector.load %arg6[%c7, %c0_110, %c0_111] : memref<8x56x16xbf16, #tpu.memory_space<vmem>>, vector<1x56x16xbf16>
    %83 = vector.shape_cast %82 : vector<1x56x16xbf16> to vector<56x16xbf16>
    %cst_112 = arith.constant dense<0.000000e+00> : vector<8x16xf32>
    %84 = tpu.matmul %29, %83, %cst_112 {dimension_numbers = #tpu.dot_dimension_numbers<[1], [0], [0], [1], [0, 0, 1, 1], [], []>} : vector<8x56xbf16>, vector<56x16xbf16>, vector<8x16xf32> -> vector<8x16xf32>
    %85 = arith.addf %84, %32 : vector<8x16xf32>
    %c0_113 = arith.constant 0 : index
    %c7_114 = arith.constant 7 : index
    %c0_115 = arith.constant 0 : index
    %c0_116 = arith.constant 0 : index
    %86 = vector.load %arg5[%c0_113, %c7_114, %c0_115, %c0_116] : memref<1x8x8x16xf32, #tpu.memory_space<vmem>>, vector<1x1x8x16xf32>
    %87 = vector.shape_cast %86 : vector<1x1x8x16xf32> to vector<8x16xf32>
    %88 = vector.shape_cast %85 : vector<8x16xf32> to vector<1x1x8x16xf32>
    tpu.vector_store %arg5[%c0_113, %c7_114, %c0_115, %c0_116], %88 {strides = array<i32>} : memref<1x8x8x16xf32, #tpu.memory_space<vmem>>, vector<1x1x8x16xf32>,
    return
  }
  func.func @transform_0(%arg0: i32, %arg1: i32) -> (i32, i32, i32, i32) {
    %c0_i32 = arith.constant 0 : i32
    %c0_i32_0 = arith.constant 0 : i32
    %c0_i32_1 = arith.constant 0 : i32
    return %arg0, %c0_i32, %c0_i32_0, %arg1 : i32, i32, i32, i32
  }
  func.func @transform_1(%arg0: i32, %arg1: i32) -> (i32, i32) {
    %c0_i32 = arith.constant 0 : i32
    %c0_i32_0 = arith.constant 0 : i32
    %c0_i32_1 = arith.constant 0 : i32
    return %c0_i32, %c0_i32_0 : i32, i32
  }
  func.func @transform_2(%arg0: i32, %arg1: i32) -> (i32, i32) {
    %c0_i32 = arith.constant 0 : i32
    %c0_i32_0 = arith.constant 0 : i32
    %c0_i32_1 = arith.constant 0 : i32
    return %c0_i32, %c0_i32_0 : i32, i32
  }
  func.func @transform_3(%arg0: i32, %arg1: i32) -> (i32, i32, i32, i32) {
    %c0_i32 = arith.constant 0 : i32
    %c0_i32_0 = arith.constant 0 : i32
    %c0_i32_1 = arith.constant 0 : i32
    return %arg0, %c0_i32, %c0_i32_0, %arg1 : i32, i32, i32, i32
  }
}

</mosaic_0001>

<llo_original>
// kernel: tpu_custom_call.1
$region0: #{tpu_custom_call.1}
  #allocation0 [shape = 'u32[]', space=smem, size = 0x4, offset = 0x4, fixed_abs, tag = 'smem constant byte address 0x4 - core index']
  #allocation1 [shape = 'u32[144,128]{1,0:T(1,128)}', space=vmem, size = 0x12000, scoped, tag = 'internal scratch']
  #allocation2 [shape = 'bf16[8,56,16]{2,1,0:T(8,128)(2,1)}', space=vmem, size = 0x1c000, scoped, tag = 'scratch operand']
  %s0 = inlined_call_operand.vmem [shape: bf16[2,20,4,16], index: 0, kind: input, shape index: {}]
  %s1 = inlined_call_operand.vmem [shape: bf16[8,56], index: 1, kind: input, shape index: {}]
  %s2 = inlined_call_operand.vmem [shape: f32[8,1], index: 2, kind: input, shape index: {}]
  %s3 = inlined_call_operand.hbm [shape: f32[2,8,8,16], index: 3, kind: output, shape index: {}]
  %s4 = sld [smem:[#allocation0]]
  $region45: #{tpu_custom_call.1} parent=0
    _
  %s6 = ssub.s32 1, %s4
  %s7 = scalar_select 0, %s6, %s4
  $region1: #{tpu_custom_call.1} parent=0
    #allocation3 [shape = 'u8[65536]{0}', space=vmem, size = 0x10000, scoped, tag = 'output window, operand 0']
    #allocation4 [shape = 's32[2]{0}', space=sflag, size = 0x8, scoped, tag = 'scoped memory for tpu_custom_call.1']
    %8 = vsyncpa [#allocation4], 0
    %s9 = scalar_lea.sflag [#allocation4], 1
    %10 = vsyncpa %s9, 0
    loop: start=0, step=1, limit=4
    $region2: #{tpu_custom_call.1} parent=1 // loop_pre_header
      _
    $region3: #{tpu_custom_call.1} parent=1 // loop_header
      %s12 = sphi 0, %s16
      %p13 = scmp.ge.s32.totalorder %s12, 4
      %s19 = sphi 0, %s31
      %s20 = sphi 0, %s27
      %s21 = sphi 0, %s19
      %s22 = sphi 0, %s20
      %s23 = sphi 0, %s21
      %s24 = sphi 0, %s22
      %s36 = sphi 0, %s38
      %s39 = sphi 0, %s36
      %s40 = sphi 0, %s39
      %s56 = sphi 0, %s40
      %s60 = sphi 0, %s60
      %s62 = sphi 0, %s60
      %s63 = sphi 0, %s62
      %s77 = sphi 0, %s63
      %s81 = sphi 0, %s81
      %s83 = sphi 0, %s81
      %s84 = sphi 0, %s83
      %s98 = sphi 0, %s84
      %s106 = sphi 0, %s108
      %s109 = sphi 0, %s106
      %s110 = sphi 0, %s109
      %s126 = sphi 0, %s110
    $region4: #{tpu_custom_call.1} parent=1 // loop_header_branch
      %15 = sbr.rel (%p13) target = $region8
    $region5: #{tpu_custom_call.1} parent=1 // loop_body
      %s17 = ssub.s32 %s12, 1
      %s18 = ssub.s32 %s12, 2
      %s25 = sadd.s32 1, %s20
      %p26 = scmp.ge.s32.totalorder %s25, 1
      %s27 = scalar_select %p26, 0, %s25
      %s28 = sadd.s32 1, %s19
      %s29 = scalar_select %p26, %s28, %s19
      %p30 = scmp.ge.s32.totalorder %s29, 2
      %s31 = scalar_select %p30, 0, %s29
      %s32 = ssub.s32 %s19, %s31
      %s33 = ssub.s32 %s20, %s27
      %s34 = sor.u32 %s32, %s33
      %p35 = scmp.eq.s32.totalorder %s34, 0
      %s37 = sadd.s32 %s36, 1
      %s38 = scalar_select %p35, %s36, %s37
      %p41 = pneg %p35
      %p42 = scmp.eq.s32.totalorder %s12, 1
      %p43 = por %p41, %p42
      %p44 = scmp.ne.s32.totalorder %s36, %s39
      %p45 = scmp.eq.s32.totalorder %s12, 0
      %p46 = por %p44, %p45
      %p47 = scmp.ne.s32.totalorder %s36, %s39
      %p48 = scmp.eq.s32.totalorder %s17, 1
      %p49 = por %p47, %p48
      %p50 = scmp.ne.s32.totalorder %s39, %s40
      %p51 = scmp.eq.s32.totalorder %s17, 0
      %p52 = por %p50, %p51
      %p53 = scmp.ne.s32.totalorder %s39, %s40
      %p54 = scmp.eq.s32.totalorder %s18, 1
      %p55 = por %p53, %p54
      %p57 = scmp.ne.s32.totalorder %s40, %s56
      %p58 = scmp.eq.s32.totalorder %s18, 0
      %p59 = por %p57, %p58
      %s61 = sadd.s32 %s60, 1
      %p64 = scmp.eq.s32.totalorder %s12, 1
      %p65 = scmp.ne.s32.totalorder %s60, %s62
      %p66 = scmp.eq.s32.totalorder %s12, 0
      %p67 = por %p65, %p66
      %p68 = scmp.ne.s32.totalorder %s60, %s62
      %p69 = scmp.eq.s32.totalorder %s17, 1
      %p70 = por %p68, %p69
      %p71 = scmp.ne.s32.totalorder %s62, %s63
      %p72 = scmp.eq.s32.totalorder %s17, 0
      %p73 = por %p71, %p72
      %p74 = scmp.ne.s32.totalorder %s62, %s63
      %p75 = scmp.eq.s32.totalorder %s18, 1
      %p76 = por %p74, %p75
      %p78 = scmp.ne.s32.totalorder %s63, %s77
      %p79 = scmp.eq.s32.totalorder %s18, 0
      %p80 = por %p78, %p79
      %s82 = sadd.s32 %s81, 1
      %p85 = scmp.eq.s32.totalorder %s12, 1
      %p86 = scmp.ne.s32.totalorder %s81, %s83
      %p87 = scmp.eq.s32.totalorder %s12, 0
      %p88 = por %p86, %p87
      %p89 = scmp.ne.s32.totalorder %s81, %s83
      %p90 = scmp.eq.s32.totalorder %s17, 1
      %p91 = por %p89, %p90
      %p92 = scmp.ne.s32.totalorder %s83, %s84
      %p93 = scmp.eq.s32.totalorder %s17, 0
      %p94 = por %p92, %p93
      %p95 = scmp.ne.s32.totalorder %s83, %s84
      %p96 = scmp.eq.s32.totalorder %s18, 1
      %p97 = por %p95, %p96
      %p99 = scmp.ne.s32.totalorder %s84, %s98
      %p100 = scmp.eq.s32.totalorder %s18, 0
      %p101 = por %p99, %p100
      %s102 = ssub.s32 %s19, %s31
      %s103 = ssub.s32 %s20, %s27
      %s104 = sor.u32 %s102, %s103
      %p105 = scmp.eq.s32.totalorder %s104, 0
      %s107 = sadd.s32 %s106, 1
      %s108 = scalar_select %p105, %s106, %s107
      %p111 = pneg %p105
      %p112 = scmp.eq.s32.totalorder %s12, 1
      %p113 = por %p111, %p112
      %p114 = scmp.ne.s32.totalorder %s106, %s109
      %p115 = scmp.eq.s32.totalorder %s12, 0
      %p116 = por %p114, %p115
      %p117 = scmp.ne.s32.totalorder %s106, %s109
      %p118 = scmp.eq.s32.totalorder %s17, 1
      %p119 = por %p117, %p118
      %p120 = scmp.ne.s32.totalorder %s109, %s110
      %p121 = scmp.eq.s32.totalorder %s17, 0
      %p122 = por %p120, %p121
      %p123 = scmp.ne.s32.totalorder %s109, %s110
      %p124 = scmp.eq.s32.totalorder %s18, 1
      %p125 = por %p123, %p124
      %p127 = scmp.ne.s32.totalorder %s110, %s126
      %p128 = scmp.eq.s32.totalorder %s18, 0
      %p129 = por %p127, %p128
      %p130 = scmp.le.s32.totalorder 1, %s12
      %p131 = scmp.lt.s32.totalorder %s12, 3
      %p132 = pnand %p130, %p131
      %p133 = pneg %p132
      // Predicated region
      $region9: #{tpu_custom_call.1} parent=5 // pred_check
        _
      $region10: #{tpu_custom_call.1} parent=5 // pred_check_branch
        %135 = sbr.rel (%p132) target = $region12
      $region11: #{tpu_custom_call.1} parent=5 // pred_region
        %s136 = ssub.s32 %s12, 1
        // Predicated region
        $region13: #{tpu_custom_call.1} parent=11 // pred_check
          %p137 = pneg %p73
        $region14: #{tpu_custom_call.1} parent=11 // pred_check_branch
          %139 = sbr.rel (%p137) target = $region16
        $region15: #{tpu_custom_call.1} parent=11 // pred_region
          _
        $region16: #{tpu_custom_call.1} parent=11 // pred_fallthru
          _
        // Predicated region
        $region17: #{tpu_custom_call.1} parent=11 // pred_check
          %p140 = pneg %p94
        $region18: #{tpu_custom_call.1} parent=11 // pred_check_branch
          %142 = sbr.rel (%p140) target = $region20
        $region19: #{tpu_custom_call.1} parent=11 // pred_region
          _
        $region20: #{tpu_custom_call.1} parent=11 // pred_fallthru
          _
      $region12: #{tpu_custom_call.1} parent=5 // pred_fallthru
        _
      %p143 = scmp.lt.s32.totalorder %s12, 2
      // Predicated region
      $region21: #{tpu_custom_call.1} parent=5 // pred_check
        %p144 = pneg %p143
      $region22: #{tpu_custom_call.1} parent=5 // pred_check_branch
        %146 = sbr.rel (%p144) target = $region24
      $region23: #{tpu_custom_call.1} parent=5 // pred_region
        // Predicated region
        $region25: #{tpu_custom_call.1} parent=23 // pred_check
          %p147 = pneg %p46
        $region26: #{tpu_custom_call.1} parent=23 // pred_check_branch
          %149 = sbr.rel (%p147) target = $region28
        $region27: #{tpu_custom_call.1} parent=23 // pred_region
          %p150 = scmp.lt.s32.totalorder %s19, 1
          %s151 = scalar_select %p150, %s19, 1
          %p152 = scmp.lt.s32.totalorder %s20, 0
          %s153 = scalar_select %p152, %s20, 0
          %s154 = smul.addr %s151, 20
          %s155 = sadd.s32 %s153, %s154
          %s156 = smul.addr %s155, 2
          %s157 = scalar_lea.vmem %s0, %s156
        $region28: #{tpu_custom_call.1} parent=23 // pred_fallthru
          _
      $region24: #{tpu_custom_call.1} parent=5 // pred_fallthru
        _
      %p158 = scmp.le.s32.totalorder 1, %s12
      %p159 = scmp.lt.s32.totalorder %s12, 3
      %p160 = pnand %p158, %p159
      %p161 = pneg %p160
      // Predicated region
      $region29: #{tpu_custom_call.1} parent=5 // pred_check
        _
      $region30: #{tpu_custom_call.1} parent=5 // pred_check_branch
        %163 = sbr.rel (%p160) target = $region32
      $region31: #{tpu_custom_call.1} parent=5 // pred_region
        %s164 = ssub.s32 %s12, 1
        %p165 = scmp.lt.s32.totalorder %s21, 1
        %s166 = scalar_select %p165, %s21, 1
        %p167 = scmp.lt.s32.totalorder %s22, 0
        %s168 = scalar_select %p167, %s22, 0
        %s169 = smul.addr %s166, 20
        %s170 = sadd.s32 %s168, %s169
        %s171 = smul.addr %s170, 2
        %s172 = scalar_lea.vmem %s0, %s171
        %p173 = pneg %p52
        %p174 = pneg %p49
        %p175 = pneg %p73
        %p176 = pneg %p70
        %p177 = pneg %p94
        %p178 = pneg %p91
        %p179 = pneg %p122
        %p180 = pneg %p119
        %s181 = sand.u32 %s109, 1
        %s182 = scalar_lea.sflag [#allocation4], %s181
        %s183 = sand.u32 %s109, 1
        %s184 = smul.addr %s183, 64
        %s185 = scalar_lea.vmem [#allocation3], %s184
        %p186 = scmp.lt.s32.totalorder %s21, 1
        %s187 = scalar_select %p186, %s21, 1
        %p188 = scmp.lt.s32.totalorder %s22, 0
        %s189 = scalar_select %p188, %s22, 0
        %s190 = smul.addr %s187, 20
        %s191 = sadd.s32 %s189, %s190
        %s192 = smul.addr %s191, 2
        %s193 = scalar_lea.vmem %s0, %s192
        %vm195 = vcmask 125954
        %196 = vst.msk [vmem:[#allocation2] sm:$0xc] %vm195, 0
        %197 = vst.msk [vmem:[#allocation2 + $0x1c] sm:$0xc] %vm195, 0
        %198 = vst.msk [vmem:[#allocation2 + $0x38] sm:$0xc] %vm195, 0
        %199 = vst.msk [vmem:[#allocation2 + $0x54] sm:$0xc] %vm195, 0
        %200 = vst.msk [vmem:[#allocation2 + $0x70] sm:$0xc] %vm195, 0
        %201 = vst.msk [vmem:[#allocation2 + $0x8c] sm:$0xc] %vm195, 0
        %202 = vst.msk [vmem:[#allocation2 + $0xa8] sm:$0xc] %vm195, 0
        %203 = vst.msk [vmem:[#allocation2 + $0xc4] sm:$0xc] %vm195, 0
        %204 = vst.msk [vmem:[#allocation2 + $0x4] sm:$0xc] %vm195, 0
        %205 = vst.msk [vmem:[#allocation2 + $0x20] sm:$0xc] %vm195, 0
        %206 = vst.msk [vmem:[#allocation2 + $0x3c] sm:$0xc] %vm195, 0
        %207 = vst.msk [vmem:[#allocation2 + $0x58] sm:$0xc] %vm195, 0
        %208 = vst.msk [vmem:[#allocation2 + $0x74] sm:$0xc] %vm195, 0
        %209 = vst.msk [vmem:[#allocation2 + $0x90] sm:$0xc] %vm195, 0
        %210 = vst.msk [vmem:[#allocation2 + $0xac] sm:$0xc] %vm195, 0
        %211 = vst.msk [vmem:[#allocation2 + $0xc8] sm:$0xc] %vm195, 0
        %212 = vst.msk [vmem:[#allocation2 + $0x8] sm:$0xc] %vm195, 0
        %213 = vst.msk [vmem:[#allocation2 + $0x24] sm:$0xc] %vm195, 0
        %214 = vst.msk [vmem:[#allocation2 + $0x40] sm:$0xc] %vm195, 0
        %215 = vst.msk [vmem:[#allocation2 + $0x5c] sm:$0xc] %vm195, 0
        %216 = vst.msk [vmem:[#allocation2 + $0x78] sm:$0xc] %vm195, 0
        %217 = vst.msk [vmem:[#allocation2 + $0x94] sm:$0xc] %vm195, 0
        %218 = vst.msk [vmem:[#allocation2 + $0xb0] sm:$0xc] %vm195, 0
        %219 = vst.msk [vmem:[#allocation2 + $0xcc] sm:$0xc] %vm195, 0
        %220 = vst.msk [vmem:[#allocation2 + $0xc] sm:$0xc] %vm195, 0
        %221 = vst.msk [vmem:[#allocation2 + $0x28] sm:$0xc] %vm195, 0
        %222 = vst.msk [vmem:[#allocation2 + $0x44] sm:$0xc] %vm195, 0
        %223 = vst.msk [vmem:[#allocation2 + $0x60] sm:$0xc] %vm195, 0
        %224 = vst.msk [vmem:[#allocation2 + $0x7c] sm:$0xc] %vm195, 0
        %225 = vst.msk [vmem:[#allocation2 + $0x98] sm:$0xc] %vm195, 0
        %226 = vst.msk [vmem:[#allocation2 + $0xb4] sm:$0xc] %vm195, 0
        %227 = vst.msk [vmem:[#allocation2 + $0xd0] sm:$0xc] %vm195, 0
        %228 = vst.msk [vmem:[#allocation2 + $0x10] sm:$0xc] %vm195, 0
        %229 = vst.msk [vmem:[#allocation2 + $0x2c] sm:$0xc] %vm195, 0
        %230 = vst.msk [vmem:[#allocation2 + $0x48] sm:$0xc] %vm195, 0
        %231 = vst.msk [vmem:[#allocation2 + $0x64] sm:$0xc] %vm195, 0
        %232 = vst.msk [vmem:[#allocation2 + $0x80] sm:$0xc] %vm195, 0
        %233 = vst.msk [vmem:[#allocation2 + $0x9c] sm:$0xc] %vm195, 0
        %234 = vst.msk [vmem:[#allocation2 + $0xb8] sm:$0xc] %vm195, 0
        %235 = vst.msk [vmem:[#allocation2 + $0xd4] sm:$0xc] %vm195, 0
        %236 = vst.msk [vmem:[#allocation2 + $0x14] sm:$0xc] %vm195, 0
        %237 = vst.msk [vmem:[#allocation2 + $0x30] sm:$0xc] %vm195, 0
        %238 = vst.msk [vmem:[#allocation2 + $0x4c] sm:$0xc] %vm195, 0
        %239 = vst.msk [vmem:[#allocation2 + $0x68] sm:$0xc] %vm195, 0
        %240 = vst.msk [vmem:[#allocation2 + $0x84] sm:$0xc] %vm195, 0
        %241 = vst.msk [vmem:[#allocation2 + $0xa0] sm:$0xc] %vm195, 0
        %242 = vst.msk [vmem:[#allocation2 + $0xbc] sm:$0xc] %vm195, 0
        %243 = vst.msk [vmem:[#allocation2 + $0xd8] sm:$0xc] %vm195, 0
        %244 = vst.msk [vmem:[#allocation2 + $0x18] sm:$0xc] %vm195, 0
        %245 = vst.msk [vmem:[#allocation2 + $0x34] sm:$0xc] %vm195, 0
        %246 = vst.msk [vmem:[#allocation2 + $0x50] sm:$0xc] %vm195, 0
        %247 = vst.msk [vmem:[#allocation2 + $0x6c] sm:$0xc] %vm195, 0
        %248 = vst.msk [vmem:[#allocation2 + $0x88] sm:$0xc] %vm195, 0
        %249 = vst.msk [vmem:[#allocation2 + $0xa4] sm:$0xc] %vm195, 0
        %250 = vst.msk [vmem:[#allocation2 + $0xc0] sm:$0xc] %vm195, 0
        %251 = vst.msk [vmem:[#allocation2 + $0xdc] sm:$0xc] %vm195, 0
        %v252 = vld [vmem:[%s193] sm:$0x3]
        %v253 = vld [vmem:[%s193 + $0x2] sm:$0x3]
        %v254 = vld [vmem:[%s193 + $0x4] sm:$0x3]
        %v255 = vld [vmem:[%s193 + $0x6] sm:$0x3]
        %v256 = vld [vmem:[%s193 + $0x8] sm:$0x3]
        %v257 = vld [vmem:[%s193 + $0xa] sm:$0x3]
        %v258 = vld [vmem:[%s193 + $0xc] sm:$0x3]
        %v259 = vld [vmem:[%s193 + $0xe] sm:$0x3]
        %vm260 = vcmask 123904
        %261 = vst.msk [vmem:[#allocation2] sm:$0x3] %vm260, %v252
        %262 = vst.msk [vmem:[#allocation2 + $0x1c] sm:$0x3] %vm260, %v253
        %263 = vst.msk [vmem:[#allocation2 + $0x38] sm:$0x3] %vm260, %v254
        %264 = vst.msk [vmem:[#allocation2 + $0x54] sm:$0x3] %vm260, %v255
        %265 = vst.msk [vmem:[#allocation2 + $0x70] sm:$0x3] %vm260, %v256
        %266 = vst.msk [vmem:[#allocation2 + $0x8c] sm:$0x3] %vm260, %v257
        %267 = vst.msk [vmem:[#allocation2 + $0xa8] sm:$0x3] %vm260, %v258
        %268 = vst.msk [vmem:[#allocation2 + $0xc4] sm:$0x3] %vm260, %v259
        %s269 = scalar_lea.vmem %s193, 4
        %v270 = vld [vmem:[%s269] sm:$0x3]
        %v271 = vld [vmem:[%s269 + $0x2] sm:$0x3]
        %v272 = vld [vmem:[%s269 + $0x4] sm:$0x3]
        %v273 = vld [vmem:[%s269 + $0x6] sm:$0x3]
        %v274 = vld [vmem:[%s269 + $0x8] sm:$0x3]
        %v275 = vld [vmem:[%s269 + $0xa] sm:$0x3]
        %v276 = vld [vmem:[%s269 + $0xc] sm:$0x3]
        %v277 = vld [vmem:[%s269 + $0xe] sm:$0x3]
        %278 = vst.msk [vmem:[#allocation2 + $0x4] sm:$0x3] %vm260, %v270
        %279 = vst.msk [vmem:[#allocation2 + $0x20] sm:$0x3] %vm260, %v271
        %280 = vst.msk [vmem:[#allocation2 + $0x3c] sm:$0x3] %vm260, %v272
        %281 = vst.msk [vmem:[#allocation2 + $0x58] sm:$0x3] %vm260, %v273
        %282 = vst.msk [vmem:[#allocation2 + $0x74] sm:$0x3] %vm260, %v274
        %283 = vst.msk [vmem:[#allocation2 + $0x90] sm:$0x3] %vm260, %v275
        %284 = vst.msk [vmem:[#allocation2 + $0xac] sm:$0x3] %vm260, %v276
        %285 = vst.msk [vmem:[#allocation2 + $0xc8] sm:$0x3] %vm260, %v277
        %s286 = scalar_lea.vmem %s193, 8
        %v287 = vld [vmem:[%s286] sm:$0x3]
        %v288 = vld [vmem:[%s286 + $0x2] sm:$0x3]
        %v289 = vld [vmem:[%s286 + $0x4] sm:$0x3]
        %v290 = vld [vmem:[%s286 + $0x6] sm:$0x3]
        %v291 = vld [vmem:[%s286 + $0x8] sm:$0x3]
        %v292 = vld [vmem:[%s286 + $0xa] sm:$0x3]
        %v293 = vld [vmem:[%s286 + $0xc] sm:$0x3]
        %v294 = vld [vmem:[%s286 + $0xe] sm:$0x3]
        %295 = vst.msk [vmem:[#allocation2 + $0x8] sm:$0x3] %vm260, %v287
        %296 = vst.msk [vmem:[#allocation2 + $0x24] sm:$0x3] %vm260, %v288
        %297 = vst.msk [vmem:[#allocation2 + $0x40] sm:$0x3] %vm260, %v289
        %298 = vst.msk [vmem:[#allocation2 + $0x5c] sm:$0x3] %vm260, %v290
        %299 = vst.msk [vmem:[#allocation2 + $0x78] sm:$0x3] %vm260, %v291
        %300 = vst.msk [vmem:[#allocation2 + $0x94] sm:$0x3] %vm260, %v292
        %301 = vst.msk [vmem:[#allocation2 + $0xb0] sm:$0x3] %vm260, %v293
        %302 = vst.msk [vmem:[#allocation2 + $0xcc] sm:$0x3] %vm260, %v294
        %s303 = scalar_lea.vmem %s193, 12
        %v304 = vld [vmem:[%s303] sm:$0x3]
        %v305 = vld [vmem:[%s303 + $0x2] sm:$0x3]
        %v306 = vld [vmem:[%s303 + $0x4] sm:$0x3]
        %v307 = vld [vmem:[%s303 + $0x6] sm:$0x3]
        %v308 = vld [vmem:[%s303 + $0x8] sm:$0x3]
        %v309 = vld [vmem:[%s303 + $0xa] sm:$0x3]
        %v310 = vld [vmem:[%s303 + $0xc] sm:$0x3]
        %v311 = vld [vmem:[%s303 + $0xe] sm:$0x3]
        %312 = vst.msk [vmem:[#allocation2 + $0xc] sm:$0x3] %vm260, %v304
        %313 = vst.msk [vmem:[#allocation2 + $0x28] sm:$0x3] %vm260, %v305
        %314 = vst.msk [vmem:[#allocation2 + $0x44] sm:$0x3] %vm260, %v306
        %315 = vst.msk [vmem:[#allocation2 + $0x60] sm:$0x3] %vm260, %v307
        %316 = vst.msk [vmem:[#allocation2 + $0x7c] sm:$0x3] %vm260, %v308
        %317 = vst.msk [vmem:[#allocation2 + $0x98] sm:$0x3] %vm260, %v309
        %318 = vst.msk [vmem:[#allocation2 + $0xb4] sm:$0x3] %vm260, %v310
        %319 = vst.msk [vmem:[#allocation2 + $0xd0] sm:$0x3] %vm260, %v311
        %s320 = scalar_lea.vmem %s193, 16
        %v321 = vld [vmem:[%s320] sm:$0x3]
        %v322 = vld [vmem:[%s320 + $0x2] sm:$0x3]
        %v323 = vld [vmem:[%s320 + $0x4] sm:$0x3]
        %v324 = vld [vmem:[%s320 + $0x6] sm:$0x3]
        %v325 = vld [vmem:[%s320 + $0x8] sm:$0x3]
        %v326 = vld [vmem:[%s320 + $0xa] sm:$0x3]
        %v327 = vld [vmem:[%s320 + $0xc] sm:$0x3]
        %v328 = vld [vmem:[%s320 + $0xe] sm:$0x3]
        %329 = vst.msk [vmem:[#allocation2 + $0x10] sm:$0x3] %vm260, %v321
        %330 = vst.msk [vmem:[#allocation2 + $0x2c] sm:$0x3] %vm260, %v322
        %331 = vst.msk [vmem:[#allocation2 + $0x48] sm:$0x3] %vm260, %v323
        %332 = vst.msk [vmem:[#allocation2 + $0x64] sm:$0x3] %vm260, %v324
        %333 = vst.msk [vmem:[#allocation2 + $0x80] sm:$0x3] %vm260, %v325
        %334 = vst.msk [vmem:[#allocation2 + $0x9c] sm:$0x3] %vm260, %v326
        %335 = vst.msk [vmem:[#allocation2 + $0xb8] sm:$0x3] %vm260, %v327
        %336 = vst.msk [vmem:[#allocation2 + $0xd4] sm:$0x3] %vm260, %v328
        %s337 = scalar_lea.vmem %s193, 20
        %v338 = vld [vmem:[%s337] sm:$0x3]
        %v339 = vld [vmem:[%s337 + $0x2] sm:$0x3]
        %v340 = vld [vmem:[%s337 + $0x4] sm:$0x3]
        %v341 = vld [vmem:[%s337 + $0x6] sm:$0x3]
        %v342 = vld [vmem:[%s337 + $0x8] sm:$0x3]
        %v343 = vld [vmem:[%s337 + $0xa] sm:$0x3]
        %v344 = vld [vmem:[%s337 + $0xc] sm:$0x3]
        %v345 = vld [vmem:[%s337 + $0xe] sm:$0x3]
        %346 = vst.msk [vmem:[#allocation2 + $0x14] sm:$0x3] %vm260, %v338
        %347 = vst.msk [vmem:[#allocation2 + $0x30] sm:$0x3] %vm260, %v339
        %348 = vst.msk [vmem:[#allocation2 + $0x4c] sm:$0x3] %vm260, %v340
        %349 = vst.msk [vmem:[#allocation2 + $0x68] sm:$0x3] %vm260, %v341
        %350 = vst.msk [vmem:[#allocation2 + $0x84] sm:$0x3] %vm260, %v342
        %351 = vst.msk [vmem:[#allocation2 + $0xa0] sm:$0x3] %vm260, %v343
        %352 = vst.msk [vmem:[#allocation2 + $0xbc] sm:$0x3] %vm260, %v344
        %353 = vst.msk [vmem:[#allocation2 + $0xd8] sm:$0x3] %vm260, %v345
        %s354 = scalar_lea.vmem %s193, 24
        %v355 = vld [vmem:[%s354] sm:$0x3]
        %v356 = vld [vmem:[%s354 + $0x2] sm:$0x3]
        %v357 = vld [vmem:[%s354 + $0x4] sm:$0x3]
        %v358 = vld [vmem:[%s354 + $0x6] sm:$0x3]
        %v359 = vld [vmem:[%s354 + $0x8] sm:$0x3]
        %v360 = vld [vmem:[%s354 + $0xa] sm:$0x3]
        %v361 = vld [vmem:[%s354 + $0xc] sm:$0x3]
        %v362 = vld [vmem:[%s354 + $0xe] sm:$0x3]
        %363 = vst.msk [vmem:[#allocation2 + $0x18] sm:$0x3] %vm260, %v355
        %364 = vst.msk [vmem:[#allocation2 + $0x34] sm:$0x3] %vm260, %v356
        %365 = vst.msk [vmem:[#allocation2 + $0x50] sm:$0x3] %vm260, %v357
        %366 = vst.msk [vmem:[#allocation2 + $0x6c] sm:$0x3] %vm260, %v358
        %367 = vst.msk [vmem:[#allocation2 + $0x88] sm:$0x3] %vm260, %v359
        %368 = vst.msk [vmem:[#allocation2 + $0xa4] sm:$0x3] %vm260, %v360
        %369 = vst.msk [vmem:[#allocation2 + $0xc0] sm:$0x3] %vm260, %v361
        %370 = vst.msk [vmem:[#allocation2 + $0xdc] sm:$0x3] %vm260, %v362
        %v371 = vld [vmem:[%s1] sm:$0xf]
        %v372 = vld [vmem:[%s2] sm:$0xff]
        %374 = vset.pattern.permute.xlu0 0
        %375 = vperm.xlu0 %374, %v372
        %v376 = vpop.permute.xlu0 %375
        %v378 = vld [vmem:[#allocation2] sm:$0xf]
        %v379 = vld [vmem:[#allocation2 + $0x4] sm:$0xf]
        %v380 = vld [vmem:[#allocation2 + $0x8] sm:$0xf]
        %v381 = vld [vmem:[#allocation2 + $0xc] sm:$0xf]
        %v382 = vld [vmem:[#allocation2 + $0x10] sm:$0xf]
        %v383 = vld [vmem:[#allocation2 + $0x14] sm:$0xf]
        %v384 = vld [vmem:[#allocation2 + $0x18] sm:$0xf]
        %v392 = vunpack.c.l.b16 %v378
        %v393 = vunpack.c.l.b16 %v379
        %v394 = vunpack.c.l.b16 %v380
        %v395 = vunpack.c.l.b16 %v381
        %v396 = vunpack.c.l.b16 %v382
        %v397 = vunpack.c.l.b16 %v383
        %v398 = vunpack.c.l.b16 %v384
        %v399 = vpack.c.b16 %v393, %v392
        %v400 = vpack.c.b16 %v395, %v394
        %v401 = vpack.c.b16 %v397, %v396
        %v402 = vpack.c.b16 %v398, %v398
        %vm406 = vcmask 457728
        %v408 = vsel %vm406, %v371, 0
        %vm410 = vcmask 1043456
        %v412 = vsel %vm410, %v402, 0
        %414 = vmatprep.subr.bf16.mxu0 0
        %415 = vmatpush1.bf16.msra.mxu0 0
        %416 = vmatprep.subr.bf16.mxu0 0
        %417 = vmatpush1.bf16.msra.mxu0 0
        %418 = vmatprep.subr.bf16.mxu0 0
        %419 = vmatpush1.bf16.msra.mxu0 0
        %420 = vmatprep.subr.bf16.mxu0 0
        %421 = vmatpush1.bf16.msra.mxu0 0
        %422 = vmatprep.subr.bf16.mxu0 0
        %423 = vmatpush1.bf16.msra.mxu0 %v412
        %424 = vmatprep.subr.bf16.mxu0 0
        %425 = vmatpush1.bf16.msra.mxu0 %v401
        %426 = vmatprep.subr.bf16.mxu0 0
        %427 = vmatpush1.bf16.msra.mxu0 %v400
        %428 = vmatprep.subr.bf16.mxu0 0
        %429 = vmatpush1.bf16.msra.mxu0 %v399
        %430 = vmatprep.subr.bf16.mxu0 0
        %431 = vmatpush2.bf16.msra.mxu0 0
        %432 = vmatprep.subr.bf16.mxu0 0
        %433 = vmatpush2.bf16.msra.mxu0 0
        %434 = vmatprep.subr.bf16.mxu0 0
        %435 = vmatpush2.bf16.msra.mxu0 0
        %436 = vmatprep.subr.bf16.mxu0 0
        %437 = vmatpush2.bf16.msra.mxu0 0
        %438 = vmatprep.subr.bf16.mxu0 0
        %439 = vmatpush2.bf16.msra.mxu0 0
        %440 = vmatprep.subr.bf16.mxu0 0
        %441 = vmatpush2.bf16.msra.mxu0 0
        %442 = vmatprep.subr.bf16.mxu0 0
        %443 = vmatpush2.bf16.msra.mxu0 0
        %444 = vmatprep.subr.bf16.mxu0 0
        %445 = vmatpush2.bf16.msra.mxu0 0
        %446 = vmatprep.mubr.bf16.mxu0 0
        %447 = vmatmul.mubr.bf16.gmra.mxu0 %v408
        %v448 = vpop.f32.mrf.mxu0
        %v449 = vadd.f32 %v376, %v448
        %v450 = vpop.f32.mrf.mxu0
        %v451 = vpop.f32.mrf.mxu0
        %v452 = vpop.f32.mrf.mxu0
        %453 = vdwg.mxu0
        %vm454 = vcmask 130048
        %455 = vst.msk [vmem:[%s185] sm:$0xff] %vm454, %v449
        %s456 = scalar_lea.vmem [#allocation2], 28
        %v457 = vld [vmem:[%s456] sm:$0xf]
        %v458 = vld [vmem:[%s456 + $0x4] sm:$0xf]
        %v459 = vld [vmem:[%s456 + $0x8] sm:$0xf]
        %v460 = vld [vmem:[%s456 + $0xc] sm:$0xf]
        %v461 = vld [vmem:[%s456 + $0x10] sm:$0xf]
        %v462 = vld [vmem:[%s456 + $0x14] sm:$0xf]
        %v463 = vld [vmem:[%s456 + $0x18] sm:$0xf]
        %v471 = vunpack.c.l.b16 %v457
        %v472 = vunpack.c.l.b16 %v458
        %v473 = vunpack.c.l.b16 %v459
        %v474 = vunpack.c.l.b16 %v460
        %v475 = vunpack.c.l.b16 %v461
        %v476 = vunpack.c.l.b16 %v462
        %v477 = vunpack.c.l.b16 %v463
        %v478 = vpack.c.b16 %v472, %v471
        %v479 = vpack.c.b16 %v474, %v473
        %v480 = vpack.c.b16 %v476, %v475
        %v481 = vpack.c.b16 %v477, %v477
        %v486 = vsel %vm410, %v481, 0
        %488 = vmatprep.subr.bf16.mxu0 0
        %489 = vmatpush1.bf16.msra.mxu0 0
        %490 = vmatprep.subr.bf16.mxu0 0
        %491 = vmatpush1.bf16.msra.mxu0 0
        %492 = vmatprep.subr.bf16.mxu0 0
        %493 = vmatpush1.bf16.msra.mxu0 0
        %494 = vmatprep.subr.bf16.mxu0 0
        %495 = vmatpush1.bf16.msra.mxu0 0
        %496 = vmatprep.subr.bf16.mxu0 0
        %497 = vmatpush1.bf16.msra.mxu0 %v486
        %498 = vmatprep.subr.bf16.mxu0 0
        %499 = vmatpush1.bf16.msra.mxu0 %v480
        %500 = vmatprep.subr.bf16.mxu0 0
        %501 = vmatpush1.bf16.msra.mxu0 %v479
        %502 = vmatprep.subr.bf16.mxu0 0
        %503 = vmatpush1.bf16.msra.mxu0 %v478
        %504 = vmatprep.subr.bf16.mxu0 0
        %505 = vmatpush2.bf16.msra.mxu0 0
        %506 = vmatprep.subr.bf16.mxu0 0
        %507 = vmatpush2.bf16.msra.mxu0 0
        %508 = vmatprep.subr.bf16.mxu0 0
        %509 = vmatpush2.bf16.msra.mxu0 0
        %510 = vmatprep.subr.bf16.mxu0 0
        %511 = vmatpush2.bf16.msra.mxu0 0
        %512 = vmatprep.subr.bf16.mxu0 0
        %513 = vmatpush2.bf16.msra.mxu0 0
        %514 = vmatprep.subr.bf16.mxu0 0
        %515 = vmatpush2.bf16.msra.mxu0 0
        %516 = vmatprep.subr.bf16.mxu0 0
        %517 = vmatpush2.bf16.msra.mxu0 0
        %518 = vmatprep.subr.bf16.mxu0 0
        %519 = vmatpush2.bf16.msra.mxu0 0
        %520 = vmatprep.mubr.bf16.mxu0 0
        %521 = vmatmul.mubr.bf16.gmra.mxu0 %v408
        %v522 = vpop.f32.mrf.mxu0
        %v523 = vadd.f32 %v376, %v522
        %v524 = vpop.f32.mrf.mxu0
        %v525 = vpop.f32.mrf.mxu0
        %v526 = vpop.f32.mrf.mxu0
        %527 = vdwg.mxu0
        %s528 = scalar_lea.vmem %s185, 8 [#allocation3]
        %529 = vst.msk [vmem:[%s528] sm:$0xff] %vm454, %v523
        %s530 = scalar_lea.vmem [#allocation2], 56
        %v531 = vld [vmem:[%s530] sm:$0xf]
        %v532 = vld [vmem:[%s530 + $0x4] sm:$0xf]
        %v533 = vld [vmem:[%s530 + $0x8] sm:$0xf]
        %v534 = vld [vmem:[%s530 + $0xc] sm:$0xf]
        %v535 = vld [vmem:[%s530 + $0x10] sm:$0xf]
        %v536 = vld [vmem:[%s530 + $0x14] sm:$0xf]
        %v537 = vld [vmem:[%s530 + $0x18] sm:$0xf]
        %v545 = vunpack.c.l.b16 %v531
        %v546 = vunpack.c.l.b16 %v532
        %v547 = vunpack.c.l.b16 %v533
        %v548 = vunpack.c.l.b16 %v534
        %v549 = vunpack.c.l.b16 %v535
        %v550 = vunpack.c.l.b16 %v536
        %v551 = vunpack.c.l.b16 %v537
        %v552 = vpack.c.b16 %v546, %v545
        %v553 = vpack.c.b16 %v548, %v547
        %v554 = vpack.c.b16 %v550, %v549
        %v555 = vpack.c.b16 %v551, %v551
        %v560 = vsel %vm410, %v555, 0
        %562 = vmatprep.subr.bf16.mxu0 0
        %563 = vmatpush1.bf16.msra.mxu0 0
        %564 = vmatprep.subr.bf16.mxu0 0
        %565 = vmatpush1.bf16.msra.mxu0 0
        %566 = vmatprep.subr.bf16.mxu0 0
        %567 = vmatpush1.bf16.msra.mxu0 0
        %568 = vmatprep.subr.bf16.mxu0 0
        %569 = vmatpush1.bf16.msra.mxu0 0
        %570 = vmatprep.subr.bf16.mxu0 0
        %571 = vmatpush1.bf16.msra.mxu0 %v560
        %572 = vmatprep.subr.bf16.mxu0 0
        %573 = vmatpush1.bf16.msra.mxu0 %v554
        %574 = vmatprep.subr.bf16.mxu0 0
        %575 = vmatpush1.bf16.msra.mxu0 %v553
        %576 = vmatprep.subr.bf16.mxu0 0
        %577 = vmatpush1.bf16.msra.mxu0 %v552
        %578 = vmatprep.subr.bf16.mxu0 0
        %579 = vmatpush2.bf16.msra.mxu0 0
        %580 = vmatprep.subr.bf16.mxu0 0
        %581 = vmatpush2.bf16.msra.mxu0 0
        %582 = vmatprep.subr.bf16.mxu0 0
        %583 = vmatpush2.bf16.msra.mxu0 0
        %584 = vmatprep.subr.bf16.mxu0 0
        %585 = vmatpush2.bf16.msra.mxu0 0
        %586 = vmatprep.subr.bf16.mxu0 0
        %587 = vmatpush2.bf16.msra.mxu0 0
        %588 = vmatprep.subr.bf16.mxu0 0
        %589 = vmatpush2.bf16.msra.mxu0 0
        %590 = vmatprep.subr.bf16.mxu0 0
        %591 = vmatpush2.bf16.msra.mxu0 0
        %592 = vmatprep.subr.bf16.mxu0 0
        %593 = vmatpush2.bf16.msra.mxu0 0
        %594 = vmatprep.mubr.bf16.mxu0 0
        %595 = vmatmul.mubr.bf16.gmra.mxu0 %v408
        %v596 = vpop.f32.mrf.mxu0
        %v597 = vadd.f32 %v376, %v596
        %v598 = vpop.f32.mrf.mxu0
        %v599 = vpop.f32.mrf.mxu0
        %v600 = vpop.f32.mrf.mxu0
        %601 = vdwg.mxu0
        %s602 = scalar_lea.vmem %s185, 16 [#allocation3]
        %603 = vst.msk [vmem:[%s602] sm:$0xff] %vm454, %v597
        %s604 = scalar_lea.vmem [#allocation2], 84
        %v605 = vld [vmem:[%s604] sm:$0xf]
        %v606 = vld [vmem:[%s604 + $0x4] sm:$0xf]
        %v607 = vld [vmem:[%s604 + $0x8] sm:$0xf]
        %v608 = vld [vmem:[%s604 + $0xc] sm:$0xf]
        %v609 = vld [vmem:[%s604 + $0x10] sm:$0xf]
        %v610 = vld [vmem:[%s604 + $0x14] sm:$0xf]
        %v611 = vld [vmem:[%s604 + $0x18] sm:$0xf]
        %v619 = vunpack.c.l.b16 %v605
        %v620 = vunpack.c.l.b16 %v606
        %v621 = vunpack.c.l.b16 %v607
        %v622 = vunpack.c.l.b16 %v608
        %v623 = vunpack.c.l.b16 %v609
        %v624 = vunpack.c.l.b16 %v610
        %v625 = vunpack.c.l.b16 %v611
        %v626 = vpack.c.b16 %v620, %v619
        %v627 = vpack.c.b16 %v622, %v621
        %v628 = vpack.c.b16 %v624, %v623
        %v629 = vpack.c.b16 %v625, %v625
        %v634 = vsel %vm410, %v629, 0
        %636 = vmatprep.subr.bf16.mxu0 0
        %637 = vmatpush1.bf16.msra.mxu0 0
        %638 = vmatprep.subr.bf16.mxu0 0
        %639 = vmatpush1.bf16.msra.mxu0 0
        %640 = vmatprep.subr.bf16.mxu0 0
        %641 = vmatpush1.bf16.msra.mxu0 0
        %642 = vmatprep.subr.bf16.mxu0 0
        %643 = vmatpush1.bf16.msra.mxu0 0
        %644 = vmatprep.subr.bf16.mxu0 0
        %645 = vmatpush1.bf16.msra.mxu0 %v634
        %646 = vmatprep.subr.bf16.mxu0 0
        %647 = vmatpush1.bf16.msra.mxu0 %v628
        %648 = vmatprep.subr.bf16.mxu0 0
        %649 = vmatpush1.bf16.msra.mxu0 %v627
        %650 = vmatprep.subr.bf16.mxu0 0
        %651 = vmatpush1.bf16.msra.mxu0 %v626
        %652 = vmatprep.subr.bf16.mxu0 0
        %653 = vmatpush2.bf16.msra.mxu0 0
        %654 = vmatprep.subr.bf16.mxu0 0
        %655 = vmatpush2.bf16.msra.mxu0 0
        %656 = vmatprep.subr.bf16.mxu0 0
        %657 = vmatpush2.bf16.msra.mxu0 0
        %658 = vmatprep.subr.bf16.mxu0 0
        %659 = vmatpush2.bf16.msra.mxu0 0
        %660 = vmatprep.subr.bf16.mxu0 0
        %661 = vmatpush2.bf16.msra.mxu0 0
        %662 = vmatprep.subr.bf16.mxu0 0
        %663 = vmatpush2.bf16.msra.mxu0 0
        %664 = vmatprep.subr.bf16.mxu0 0
        %665 = vmatpush2.bf16.msra.mxu0 0
        %666 = vmatprep.subr.bf16.mxu0 0
        %667 = vmatpush2.bf16.msra.mxu0 0
        %668 = vmatprep.mubr.bf16.mxu0 0
        %669 = vmatmul.mubr.bf16.gmra.mxu0 %v408
        %v670 = vpop.f32.mrf.mxu0
        %v671 = vadd.f32 %v376, %v670
        %v672 = vpop.f32.mrf.mxu0
        %v673 = vpop.f32.mrf.mxu0
        %v674 = vpop.f32.mrf.mxu0
        %675 = vdwg.mxu0
        %s676 = scalar_lea.vmem %s185, 24 [#allocation3]
        %677 = vst.msk [vmem:[%s676] sm:$0xff] %vm454, %v671
        %s678 = scalar_lea.vmem [#allocation2], 112
        %v679 = vld [vmem:[%s678] sm:$0xf]
        %v680 = vld [vmem:[%s678 + $0x4] sm:$0xf]
        %v681 = vld [vmem:[%s678 + $0x8] sm:$0xf]
        %v682 = vld [vmem:[%s678 + $0xc] sm:$0xf]
        %v683 = vld [vmem:[%s678 + $0x10] sm:$0xf]
        %v684 = vld [vmem:[%s678 + $0x14] sm:$0xf]
        %v685 = vld [vmem:[%s678 + $0x18] sm:$0xf]
        %v693 = vunpack.c.l.b16 %v679
        %v694 = vunpack.c.l.b16 %v680
        %v695 = vunpack.c.l.b16 %v681
        %v696 = vunpack.c.l.b16 %v682
        %v697 = vunpack.c.l.b16 %v683
        %v698 = vunpack.c.l.b16 %v684
        %v699 = vunpack.c.l.b16 %v685
        %v700 = vpack.c.b16 %v694, %v693
        %v701 = vpack.c.b16 %v696, %v695
        %v702 = vpack.c.b16 %v698, %v697
        %v703 = vpack.c.b16 %v699, %v699
        %v708 = vsel %vm410, %v703, 0
        %710 = vmatprep.subr.bf16.mxu0 0
        %711 = vmatpush1.bf16.msra.mxu0 0
        %712 = vmatprep.subr.bf16.mxu0 0
        %713 = vmatpush1.bf16.msra.mxu0 0
        %714 = vmatprep.subr.bf16.mxu0 0
        %715 = vmatpush1.bf16.msra.mxu0 0
        %716 = vmatprep.subr.bf16.mxu0 0
        %717 = vmatpush1.bf16.msra.mxu0 0
        %718 = vmatprep.subr.bf16.mxu0 0
        %719 = vmatpush1.bf16.msra.mxu0 %v708
        %720 = vmatprep.subr.bf16.mxu0 0
        %721 = vmatpush1.bf16.msra.mxu0 %v702
        %722 = vmatprep.subr.bf16.mxu0 0
        %723 = vmatpush1.bf16.msra.mxu0 %v701
        %724 = vmatprep.subr.bf16.mxu0 0
        %725 = vmatpush1.bf16.msra.mxu0 %v700
        %726 = vmatprep.subr.bf16.mxu0 0
        %727 = vmatpush2.bf16.msra.mxu0 0
        %728 = vmatprep.subr.bf16.mxu0 0
        %729 = vmatpush2.bf16.msra.mxu0 0
        %730 = vmatprep.subr.bf16.mxu0 0
        %731 = vmatpush2.bf16.msra.mxu0 0
        %732 = vmatprep.subr.bf16.mxu0 0
        %733 = vmatpush2.bf16.msra.mxu0 0
        %734 = vmatprep.subr.bf16.mxu0 0
        %735 = vmatpush2.bf16.msra.mxu0 0
        %736 = vmatprep.subr.bf16.mxu0 0
        %737 = vmatpush2.bf16.msra.mxu0 0
        %738 = vmatprep.subr.bf16.mxu0 0
        %739 = vmatpush2.bf16.msra.mxu0 0
        %740 = vmatprep.subr.bf16.mxu0 0
        %741 = vmatpush2.bf16.msra.mxu0 0
        %742 = vmatprep.mubr.bf16.mxu0 0
        %743 = vmatmul.mubr.bf16.gmra.mxu0 %v408
        %v744 = vpop.f32.mrf.mxu0
        %v745 = vadd.f32 %v376, %v744
        %v746 = vpop.f32.mrf.mxu0
        %v747 = vpop.f32.mrf.mxu0
        %v748 = vpop.f32.mrf.mxu0
        %749 = vdwg.mxu0
        %s750 = scalar_lea.vmem %s185, 32 [#allocation3]
        %751 = vst.msk [vmem:[%s750] sm:$0xff] %vm454, %v745
        %s752 = scalar_lea.vmem [#allocation2], 140
        %v753 = vld [vmem:[%s752] sm:$0xf]
        %v754 = vld [vmem:[%s752 + $0x4] sm:$0xf]
        %v755 = vld [vmem:[%s752 + $0x8] sm:$0xf]
        %v756 = vld [vmem:[%s752 + $0xc] sm:$0xf]
        %v757 = vld [vmem:[%s752 + $0x10] sm:$0xf]
        %v758 = vld [vmem:[%s752 + $0x14] sm:$0xf]
        %v759 = vld [vmem:[%s752 + $0x18] sm:$0xf]
        %v767 = vunpack.c.l.b16 %v753
        %v768 = vunpack.c.l.b16 %v754
        %v769 = vunpack.c.l.b16 %v755
        %v770 = vunpack.c.l.b16 %v756
        %v771 = vunpack.c.l.b16 %v757
        %v772 = vunpack.c.l.b16 %v758
        %v773 = vunpack.c.l.b16 %v759
        %v774 = vpack.c.b16 %v768, %v767
        %v775 = vpack.c.b16 %v770, %v769
        %v776 = vpack.c.b16 %v772, %v771
        %v777 = vpack.c.b16 %v773, %v773
        %v782 = vsel %vm410, %v777, 0
        %784 = vmatprep.subr.bf16.mxu0 0
        %785 = vmatpush1.bf16.msra.mxu0 0
        %786 = vmatprep.subr.bf16.mxu0 0
        %787 = vmatpush1.bf16.msra.mxu0 0
        %788 = vmatprep.subr.bf16.mxu0 0
        %789 = vmatpush1.bf16.msra.mxu0 0
        %790 = vmatprep.subr.bf16.mxu0 0
        %791 = vmatpush1.bf16.msra.mxu0 0
        %792 = vmatprep.subr.bf16.mxu0 0
        %793 = vmatpush1.bf16.msra.mxu0 %v782
        %794 = vmatprep.subr.bf16.mxu0 0
        %795 = vmatpush1.bf16.msra.mxu0 %v776
        %796 = vmatprep.subr.bf16.mxu0 0
        %797 = vmatpush1.bf16.msra.mxu0 %v775
        %798 = vmatprep.subr.bf16.mxu0 0
        %799 = vmatpush1.bf16.msra.mxu0 %v774
        %800 = vmatprep.subr.bf16.mxu0 0
        %801 = vmatpush2.bf16.msra.mxu0 0
        %802 = vmatprep.subr.bf16.mxu0 0
        %803 = vmatpush2.bf16.msra.mxu0 0
        %804 = vmatprep.subr.bf16.mxu0 0
        %805 = vmatpush2.bf16.msra.mxu0 0
        %806 = vmatprep.subr.bf16.mxu0 0
        %807 = vmatpush2.bf16.msra.mxu0 0
        %808 = vmatprep.subr.bf16.mxu0 0
        %809 = vmatpush2.bf16.msra.mxu0 0
        %810 = vmatprep.subr.bf16.mxu0 0
        %811 = vmatpush2.bf16.msra.mxu0 0
        %812 = vmatprep.subr.bf16.mxu0 0
        %813 = vmatpush2.bf16.msra.mxu0 0
        %814 = vmatprep.subr.bf16.mxu0 0
        %815 = vmatpush2.bf16.msra.mxu0 0
        %816 = vmatprep.mubr.bf16.mxu0 0
        %817 = vmatmul.mubr.bf16.gmra.mxu0 %v408
        %v818 = vpop.f32.mrf.mxu0
        %v819 = vadd.f32 %v376, %v818
        %v820 = vpop.f32.mrf.mxu0
        %v821 = vpop.f32.mrf.mxu0
        %v822 = vpop.f32.mrf.mxu0
        %823 = vdwg.mxu0
        %s824 = scalar_lea.vmem %s185, 40 [#allocation3]
        %825 = vst.msk [vmem:[%s824] sm:$0xff] %vm454, %v819
        %s826 = scalar_lea.vmem [#allocation2], 168
        %v827 = vld [vmem:[%s826] sm:$0xf]
        %v828 = vld [vmem:[%s826 + $0x4] sm:$0xf]
        %v829 = vld [vmem:[%s826 + $0x8] sm:$0xf]
        %v830 = vld [vmem:[%s826 + $0xc] sm:$0xf]
        %v831 = vld [vmem:[%s826 + $0x10] sm:$0xf]
        %v832 = vld [vmem:[%s826 + $0x14] sm:$0xf]
        %v833 = vld [vmem:[%s826 + $0x18] sm:$0xf]
        %v841 = vunpack.c.l.b16 %v827
        %v842 = vunpack.c.l.b16 %v828
        %v843 = vunpack.c.l.b16 %v829
        %v844 = vunpack.c.l.b16 %v830
        %v845 = vunpack.c.l.b16 %v831
        %v846 = vunpack.c.l.b16 %v832
        %v847 = vunpack.c.l.b16 %v833
        %v848 = vpack.c.b16 %v842, %v841
        %v849 = vpack.c.b16 %v844, %v843
        %v850 = vpack.c.b16 %v846, %v845
        %v851 = vpack.c.b16 %v847, %v847
        %v856 = vsel %vm410, %v851, 0
        %858 = vmatprep.subr.bf16.mxu0 0
        %859 = vmatpush1.bf16.msra.mxu0 0
        %860 = vmatprep.subr.bf16.mxu0 0
        %861 = vmatpush1.bf16.msra.mxu0 0
        %862 = vmatprep.subr.bf16.mxu0 0
        %863 = vmatpush1.bf16.msra.mxu0 0
        %864 = vmatprep.subr.bf16.mxu0 0
        %865 = vmatpush1.bf16.msra.mxu0 0
        %866 = vmatprep.subr.bf16.mxu0 0
        %867 = vmatpush1.bf16.msra.mxu0 %v856
        %868 = vmatprep.subr.bf16.mxu0 0
        %869 = vmatpush1.bf16.msra.mxu0 %v850
        %870 = vmatprep.subr.bf16.mxu0 0
        %871 = vmatpush1.bf16.msra.mxu0 %v849
        %872 = vmatprep.subr.bf16.mxu0 0
        %873 = vmatpush1.bf16.msra.mxu0 %v848
        %874 = vmatprep.subr.bf16.mxu0 0
        %875 = vmatpush2.bf16.msra.mxu0 0
        %876 = vmatprep.subr.bf16.mxu0 0
        %877 = vmatpush2.bf16.msra.mxu0 0
        %878 = vmatprep.subr.bf16.mxu0 0
        %879 = vmatpush2.bf16.msra.mxu0 0
        %880 = vmatprep.subr.bf16.mxu0 0
        %881 = vmatpush2.bf16.msra.mxu0 0
        %882 = vmatprep.subr.bf16.mxu0 0
        %883 = vmatpush2.bf16.msra.mxu0 0
        %884 = vmatprep.subr.bf16.mxu0 0
        %885 = vmatpush2.bf16.msra.mxu0 0
        %886 = vmatprep.subr.bf16.mxu0 0
        %887 = vmatpush2.bf16.msra.mxu0 0
        %888 = vmatprep.subr.bf16.mxu0 0
        %889 = vmatpush2.bf16.msra.mxu0 0
        %890 = vmatprep.mubr.bf16.mxu0 0
        %891 = vmatmul.mubr.bf16.gmra.mxu0 %v408
        %v892 = vpop.f32.mrf.mxu0
        %v893 = vadd.f32 %v376, %v892
        %v894 = vpop.f32.mrf.mxu0
        %v895 = vpop.f32.mrf.mxu0
        %v896 = vpop.f32.mrf.mxu0
        %897 = vdwg.mxu0
        %s898 = scalar_lea.vmem %s185, 48 [#allocation3]
        %899 = vst.msk [vmem:[%s898] sm:$0xff] %vm454, %v893
        %s900 = scalar_lea.vmem [#allocation2], 196
        %v901 = vld [vmem:[%s900] sm:$0xf]
        %v902 = vld [vmem:[%s900 + $0x4] sm:$0xf]
        %v903 = vld [vmem:[%s900 + $0x8] sm:$0xf]
        %v904 = vld [vmem:[%s900 + $0xc] sm:$0xf]
        %v905 = vld [vmem:[%s900 + $0x10] sm:$0xf]
        %v906 = vld [vmem:[%s900 + $0x14] sm:$0xf]
        %v907 = vld [vmem:[%s900 + $0x18] sm:$0xf]
        %v915 = vunpack.c.l.b16 %v901
        %v916 = vunpack.c.l.b16 %v902
        %v917 = vunpack.c.l.b16 %v903
        %v918 = vunpack.c.l.b16 %v904
        %v919 = vunpack.c.l.b16 %v905
        %v920 = vunpack.c.l.b16 %v906
        %v921 = vunpack.c.l.b16 %v907
        %v922 = vpack.c.b16 %v916, %v915
        %v923 = vpack.c.b16 %v918, %v917
        %v924 = vpack.c.b16 %v920, %v919
        %v925 = vpack.c.b16 %v921, %v921
        %v930 = vsel %vm410, %v925, 0
        %932 = vmatprep.subr.bf16.mxu0 0
        %933 = vmatpush1.bf16.msra.mxu0 0
        %934 = vmatprep.subr.bf16.mxu0 0
        %935 = vmatpush1.bf16.msra.mxu0 0
        %936 = vmatprep.subr.bf16.mxu0 0
        %937 = vmatpush1.bf16.msra.mxu0 0
        %938 = vmatprep.subr.bf16.mxu0 0
        %939 = vmatpush1.bf16.msra.mxu0 0
        %940 = vmatprep.subr.bf16.mxu0 0
        %941 = vmatpush1.bf16.msra.mxu0 %v930
        %942 = vmatprep.subr.bf16.mxu0 0
        %943 = vmatpush1.bf16.msra.mxu0 %v924
        %944 = vmatprep.subr.bf16.mxu0 0
        %945 = vmatpush1.bf16.msra.mxu0 %v923
        %946 = vmatprep.subr.bf16.mxu0 0
        %947 = vmatpush1.bf16.msra.mxu0 %v922
        %948 = vmatprep.subr.bf16.mxu0 0
        %949 = vmatpush2.bf16.msra.mxu0 0
        %950 = vmatprep.subr.bf16.mxu0 0
        %951 = vmatpush2.bf16.msra.mxu0 0
        %952 = vmatprep.subr.bf16.mxu0 0
        %953 = vmatpush2.bf16.msra.mxu0 0
        %954 = vmatprep.subr.bf16.mxu0 0
        %955 = vmatpush2.bf16.msra.mxu0 0
        %956 = vmatprep.subr.bf16.mxu0 0
        %957 = vmatpush2.bf16.msra.mxu0 0
        %958 = vmatprep.subr.bf16.mxu0 0
        %959 = vmatpush2.bf16.msra.mxu0 0
        %960 = vmatprep.subr.bf16.mxu0 0
        %961 = vmatpush2.bf16.msra.mxu0 0
        %962 = vmatprep.subr.bf16.mxu0 0
        %963 = vmatpush2.bf16.msra.mxu0 0
        %964 = vmatprep.mubr.bf16.mxu0 0
        %965 = vmatmul.mubr.bf16.gmra.mxu0 %v408
        %v966 = vpop.f32.mrf.mxu0
        %v967 = vadd.f32 %v376, %v966
        %v968 = vpop.f32.mrf.mxu0
        %v969 = vpop.f32.mrf.mxu0
        %v970 = vpop.f32.mrf.mxu0
        %971 = vdwg.mxu0
        %s972 = scalar_lea.vmem %s185, 56 [#allocation3]
        %973 = vst.msk [vmem:[%s972] sm:$0xff] %vm454, %v967
        %s974 = sand.u32 %s109, 1
        %s975 = scalar_lea.sflag [#allocation4], %s974
        %s976 = sand.u32 %s109, 1
        %s977 = smul.addr %s976, 64
        %s978 = scalar_lea.vmem [#allocation3], %s977
        // Predicated region
        $region33: #{tpu_custom_call.1} parent=31 // pred_check
          %p979 = pneg %p119
        $region34: #{tpu_custom_call.1} parent=31 // pred_check_branch
          %981 = sbr.rel (%p979) target = $region36
        $region35: #{tpu_custom_call.1} parent=31 // pred_region
          %s983 = ssub.s32 1024, 1024
          %984 = vsyncadd %s975, %s983
          %s985 = smul.addr %s21, 8
          %s986 = sadd.s32 %s22, %s985
          %s987 = smul.addr %s986, 128
          %s988 = scalar_lea.hbm %s3, %s987
          %s989 = sshll.u32 %s978, 4
          %s990 = int_to_ptr.vmem [resolvable:$true] %s989
          %995 = dma.vmem_to_hbm [thread:$0]  %s990, 1024, %s988, %s975, 128, 128, 8
        $region36: #{tpu_custom_call.1} parent=31 // pred_fallthru
          _
      $region32: #{tpu_custom_call.1} parent=5 // pred_fallthru
        _
      %p996 = scmp.le.s32.totalorder 2, %s12
      // Predicated region
      $region37: #{tpu_custom_call.1} parent=5 // pred_check
        %p997 = pneg %p996
      $region38: #{tpu_custom_call.1} parent=5 // pred_check_branch
        %999 = sbr.rel (%p997) target = $region40
      $region39: #{tpu_custom_call.1} parent=5 // pred_region
        %s1000 = ssub.s32 %s12, 2
        // Predicated region
        $region41: #{tpu_custom_call.1} parent=39 // pred_check
          %p1001 = pneg %p125
        $region42: #{tpu_custom_call.1} parent=39 // pred_check_branch
          %1003 = sbr.rel (%p1001) target = $region44
        $region43: #{tpu_custom_call.1} parent=39 // pred_region
          %s1004 = sand.u32 %s110, 1
          %s1005 = scalar_lea.sflag [#allocation4], %s1004
          %s1006 = sand.u32 %s110, 1
          %s1007 = smul.addr %s1006, 64
          %s1008 = scalar_lea.vmem [#allocation3], %s1007
          %1009 = dma.done %s1005, 1024
        $region44: #{tpu_custom_call.1} parent=39 // pred_fallthru
          _
      $region40: #{tpu_custom_call.1} parent=5 // pred_fallthru
        _
    $region6: #{tpu_custom_call.1} parent=1 // loop_footer
      %s16 = sadd.s32 1, %s12
    $region7: #{tpu_custom_call.1} parent=1 // loop_footer_branch
      %11 = sbr.rel target = $region3
    $region8: #{tpu_custom_call.1} parent=1 // loop_exit
      _
    %1010 = vsyncpa [#allocation4], 1
    %s1011 = scalar_lea.sflag [#allocation4], 1
    %1012 = vsyncpa %s1011, 1

</llo_original>
